<compile_context>
chip_gen: v6e
topology: v6e:2x2x1
jax: 0.10.0
libtpu: 0.0.40
codegen_flags: <defaults>
</compile_context>

<pallas_src>
import functools

import numpy as np
import jax
import jax.numpy as jnp
from jax import lax
from jax.experimental import pallas as pl
from jax.experimental.pallas import tpu as pltpu


def _pqc_kernel(rx_half_ref, rzc_ref, rzs_ref, ryc_ref, rys_ref, osc_ref,
                bit_ref, cz_ref, zsgn_ref, gum_ref, out_ref, *,
                block_b, dim, num_qubits, num_layers, num_actions, obs_size):
    f32 = jnp.float32

    # |0...0> initial state.
    basis = lax.broadcasted_iota(jnp.int32, (block_b, dim), 1)
    sr = jnp.where(basis == 0, 1.0, 0.0).astype(f32)   # Re(amplitudes)
    si = jnp.zeros((block_b, dim), f32)                 # Im(amplitudes)

    # Hoisted per-wire constants (tiny VPU work, done once).
    bit_rows = [bit_ref[w:w + 1, :] for w in range(num_qubits)]   # (1, DIM) in {0,1}
    is_zero = [b == 0.0 for b in bit_rows]
    sgn_rows = [2.0 * b - 1.0 for b in bit_rows]                  # (1, DIM) +/-1
    strides = [1 << (num_qubits - 1 - w) for w in range(num_qubits)]

    def flip(state, w):
        # flipped[k] = state[k ^ strides[w]]  (static lane rolls + select;
        # wrap-around lanes are masked out by the select).
        return jnp.where(is_zero[w],
                         jnp.roll(state, -strides[w], axis=-1),
                         jnp.roll(state, strides[w], axis=-1))

    for layer in range(num_layers):
        # ---- RX(input_scaling[l, i] * x[:, i]) on wire i -------------------
        ang = rx_half_ref[layer, :, :]       # (block_b, obs) half-angles
        c_all = jnp.cos(ang)                 # one vectorized EUP call / layer
        s_all = jnp.sin(ang)
        for w in range(obs_size):
            c = c_all[:, w:w + 1]            # (B, 1)
            s = s_all[:, w:w + 1]
            pr = flip(sr, w)
            pi = flip(si, w)
            sr, si = c * sr + s * pi, c * si - s * pr

        # ---- RZ(weights[l, i]) on wire i (diagonal, scalar trig from SMEM) -
        for w in range(num_qubits):
            cp = rzc_ref[layer, w]                       # scalar cos(theta/2)
            sp = rzs_ref[layer, w] * sgn_rows[w]         # (1, DIM) signed sin
            sr, si = cp * sr - sp * si, sp * sr + cp * si

        # ---- RY(weights[l, i + num_qubits]) on wire i -----------------------
        for w in range(num_qubits):
            c = ryc_ref[layer, w]                        # scalar cos(theta/2)
            ss = rys_ref[layer, w] * sgn_rows[w]         # (1, DIM) signed sin
            pr = flip(sr, w)
            pi = flip(si, w)
            sr, si = c * sr + ss * pr, c * si + ss * pi

        # ---- CZ entangling ring (diagonal +/-1). Skipped on the last layer:
        # it cannot change |amp|^2 and PauliZ is a diagonal observable. ------
        if layer < num_layers - 1:
            czs = cz_ref[...]
            sr = sr * czs
            si = si * czs

    # <Z_a> = sum_k |amp_k|^2 * (+/-1): VPU multiply + lane reduction (no MXU).
    pop = sr * sr + si * si                               # (B, DIM)
    cols = [jnp.sum(pop * zsgn_ref[a:a + 1, :], axis=-1, keepdims=True)
            for a in range(num_actions)]
    logits = jnp.concatenate(cols, axis=-1)               # (B, A)
    scaled = logits * osc_ref[...]                        # (B, A)

    # log-softmax (== log of Categorical probs).
    m = jnp.max(scaled, axis=-1, keepdims=True)
    lse = m + jnp.log(jnp.sum(jnp.exp(scaled - m), axis=-1, keepdims=True))
    logp = scaled - lse                                   # (B, A)

    # Categorical sampling via Gumbel-max; noise supplied by the wrapper PRNG.
    score = logp + gum_ref[...]
    smax = jnp.max(score, axis=-1, keepdims=True)
    aidx = lax.broadcasted_iota(jnp.int32, (block_b, num_actions), 1)
    action = jnp.min(jnp.where(score >= smax, aidx, num_actions),
                     axis=-1, keepdims=True)              # (B, 1), ties -> lowest idx
    lp_sel = jnp.sum(jnp.where(aidx == action, logp, 0.0),
                     axis=-1, keepdims=True)              # (B, 1)

    # Lane-dense packed output: lane 0 = action (as f32), lane 1 = log_prob.
    lane = lax.broadcasted_iota(jnp.int32, (block_b, 128), 1)
    out_ref[...] = jnp.where(lane == 0, action.astype(f32),
                             jnp.where(lane == 1, lp_sel, 0.0))


def reinforce_agent_quantum_forward(x, input_scaling, weights, output_scaling,
                                    seed, *, num_qubits, num_layers,
                                    num_actions, observation_size):
    f32 = jnp.float32
    batch = x.shape[0]
    dim = 2 ** num_qubits

    # Batch padding / tiling: fill sublanes (multiple of 8) and expose a
    # parallel grid axis so multi-TensorCore chips (v7x) split the batch.
    block_b = 128 if batch > 128 else ((batch + 7) // 8) * 8
    b_pad = ((batch + block_b - 1) // block_b) * block_b
    x_pad = jnp.zeros((b_pad, observation_size), f32).at[:batch].set(x.astype(f32))

    # Constant tables (numpy glue).
    idx = np.arange(dim)
    wire_bits = ((idx[None, :] >> (num_qubits - 1 - np.arange(num_qubits)[:, None])) & 1)
    if num_qubits == 2:
        cz = (-1.0) ** (wire_bits[0] * wire_bits[1])
    else:
        cz = np.ones(dim)
        for i in range(num_qubits):
            cz = cz * (-1.0) ** (wire_bits[i] * wire_bits[(i + 1) % num_qubits])
    cz = cz.reshape(1, dim).astype(np.float32)                        # (1, DIM)
    zsign = (1.0 - 2.0 * wire_bits[:num_actions]).astype(np.float32)  # (A, DIM)
    bitf = wire_bits.astype(np.float32)                               # (Q, DIM)

    # Hoisted trig: RX half-angles per (layer, batch, wire); RZ/RY scalar trig.
    isc = input_scaling.astype(f32)[:, :observation_size]             # (L, obs)
    rx_half = 0.5 * isc[:, None, :] * x_pad[None, :, :]               # (L, B, obs)
    wh = 0.5 * weights.astype(f32)                                    # (L, 2Q)
    rz_c = jnp.cos(wh[:, :num_qubits])
    rz_s = jnp.sin(wh[:, :num_qubits])
    ry_c = jnp.cos(wh[:, num_qubits:])
    ry_s = jnp.sin(wh[:, num_qubits:])

    # Gumbel noise for categorical sampling (host/XLA PRNG; the on-chip PRNG
    # has no interpret-mode lowering).  Caller must vary `seed` per step.
    gum = jax.random.gumbel(jax.random.PRNGKey(seed), (b_pad, num_actions), f32)

    kernel = functools.partial(
        _pqc_kernel, block_b=block_b, dim=dim, num_qubits=num_qubits,
        num_layers=num_layers, num_actions=num_actions,
        obs_size=observation_size)

    vmem_full = pl.BlockSpec(memory_space=pltpu.MemorySpace.VMEM)
    smem_full = pl.BlockSpec(memory_space=pltpu.MemorySpace.SMEM)

    packed = pl.pallas_call(
        kernel,
        out_shape=jax.ShapeDtypeStruct((b_pad, 128), f32),
        grid=(b_pad // block_b,),
        in_specs=[
            pl.BlockSpec((num_layers, block_b, observation_size),
                         lambda b: (0, b, 0)),                # RX half-angles
            smem_full,                                        # rz cos   (L, Q)
            smem_full,                                        # rz sin   (L, Q)
            smem_full,                                        # ry cos   (L, Q)
            smem_full,                                        # ry sin   (L, Q)
            vmem_full,                                        # output_scaling (1, A)
            vmem_full,                                        # wire bit table (Q, DIM)
            vmem_full,                                        # cz sign  (1, DIM)
            vmem_full,                                        # pauliZ sign (A, DIM)
            pl.BlockSpec((block_b, num_actions), lambda b: (b, 0)),  # gumbel
        ],
        out_specs=pl.BlockSpec((block_b, 128), lambda b: (b, 0)),
        compiler_params=pltpu.CompilerParams(
            dimension_semantics=("parallel",)),
    )(rx_half, rz_c, rz_s, ry_c, ry_s,
      output_scaling.reshape(1, num_actions).astype(f32),
      jnp.asarray(bitf), jnp.asarray(cz), jnp.asarray(zsign), gum)

    action = packed[:batch, 0].astype(jnp.int32)
    log_prob = packed[:batch, 1]
    return action, log_prob


if __name__ == "__main__":
    # Small config consistent with the module: 4 qubits, 2 layers, 4 actions.
    num_qubits = 4
    num_layers = 2
    num_actions = 4
    observation_size = 4
    batch = 2

    key = jax.random.PRNGKey(0)
    k_w, k_x = jax.random.split(key)

    # Parameters exactly as in __init__ (deterministic, no checkpoint load).
    input_scaling = jnp.ones((num_layers, num_qubits), jnp.float32)
    output_scaling = jnp.ones((num_actions,), jnp.float32)
    weights = jax.random.uniform(k_w, (num_layers, 2 * num_qubits),
                                 jnp.float32, -np.pi, np.pi)

    # Inputs mimicking encode_input: binary-encode small ints, scaled by pi.
    vals = np.array(jax.random.randint(k_x, (batch,), 0, 2 ** observation_size))
    x_np = np.zeros((batch, observation_size), np.float32)
    for i, v in enumerate(vals):
        bits = bin(int(v))[2:].zfill(observation_size)
        x_np[i] = [int(b) * np.pi for b in bits]
    x = jnp.asarray(x_np)

    action, log_prob = reinforce_agent_quantum_forward(
        x, input_scaling, weights, output_scaling, seed=0,
        num_qubits=num_qubits, num_layers=num_layers,
        num_actions=num_actions, observation_size=observation_size)
    jax.block_until_ready((action, log_prob))

    assert action.shape == (batch,) and log_prob.shape == (batch,)
    assert bool(jnp.all((action >= 0) & (action < num_actions)))
    assert bool(jnp.all(jnp.isfinite(log_prob))) and bool(jnp.all(log_prob <= 0.0))
    # TODO(synk): sampling uses host-generated Gumbel noise (Gumbel-max), so
    # actions match torch's Categorical.sample() distributionally, not bitwise.
    print("KERNEL_OK")
</pallas_src>

<mosaic_0001>
module attributes {stable_mosaic.version = 11 : i64} {
  func.func @_pqc_kernel(%arg0: i32, %arg1: memref<2x8x4xf32, #tpu.memory_space<vmem>>, %arg2: memref<2x4xf32, #tpu.memory_space<smem>>, %arg3: memref<2x4xf32, #tpu.memory_space<smem>>, %arg4: memref<2x4xf32, #tpu.memory_space<smem>>, %arg5: memref<2x4xf32, #tpu.memory_space<smem>>, %arg6: memref<1x4xf32, #tpu.memory_space<vmem>>, %arg7: memref<4x16xf32, #tpu.memory_space<vmem>>, %arg8: memref<1x16xf32, #tpu.memory_space<vmem>>, %arg9: memref<4x16xf32, #tpu.memory_space<vmem>>, %arg10: memref<8x4xf32, #tpu.memory_space<vmem>>, %arg11: memref<8x128xf32, #tpu.memory_space<vmem>>) attributes {dimension_semantics = [#tpu.dimension_semantics<parallel>], iteration_bounds = array<i64: 1>, scalar_prefetch = 0 : i64, scratch_operands = 0 : i64, tpu.core_type = #tpu.core_type<tc>, window_params = [{transform_indices = @transform_0, window_bounds = array<i64: 2, 8, 4>}, {transform_indices = @transform_1, window_bounds = array<i64: 2, 4>}, {transform_indices = @transform_2, window_bounds = array<i64: 2, 4>}, {transform_indices = @transform_3, window_bounds = array<i64: 2, 4>}, {transform_indices = @transform_4, window_bounds = array<i64: 2, 4>}, {pipeline_mode = #tpu.pipeline_mode<synchronous>, transform_indices = @transform_5, window_bounds = array<i64: 1, 4>}, {pipeline_mode = #tpu.pipeline_mode<synchronous>, transform_indices = @transform_6, window_bounds = array<i64: 4, 16>}, {pipeline_mode = #tpu.pipeline_mode<synchronous>, transform_indices = @transform_7, window_bounds = array<i64: 1, 16>}, {pipeline_mode = #tpu.pipeline_mode<synchronous>, transform_indices = @transform_8, window_bounds = array<i64: 4, 16>}, {transform_indices = @transform_9, window_bounds = array<i64: 8, 4>}, {transform_indices = @transform_10, window_bounds = array<i64: 8, 128>}]} {
    %0 = tpu.iota {dimensions = array<i32: 1>} : vector<8x16xi32>
    %c0_i32 = arith.constant 0 : i32
    %1 = vector.broadcast %c0_i32 : i32 to vector<8x16xi32>
    %2 = arith.cmpi eq, %0, %1 : vector<8x16xi32>
    %cst = arith.constant 1.000000e+00 : f32
    %cst_0 = arith.constant 0.000000e+00 : f32
    %3 = vector.broadcast %cst : f32 to vector<8x16xf32>
    %4 = vector.broadcast %cst_0 : f32 to vector<8x16xf32>
    %5 = arith.select %2, %3, %4 : vector<8x16xi1>, vector<8x16xf32>
    %cst_1 = arith.constant 0.000000e+00 : f32
    %6 = vector.broadcast %cst_1 : f32 to vector<8x16xf32>
    %c0 = arith.constant 0 : index
    %c0_2 = arith.constant 0 : index
    %7 = vector.load %arg7[%c0, %c0_2] : memref<4x16xf32, #tpu.memory_space<vmem>>, vector<1x16xf32>
    %c1 = arith.constant 1 : index
    %c0_3 = arith.constant 0 : index
    %8 = vector.load %arg7[%c1, %c0_3] : memref<4x16xf32, #tpu.memory_space<vmem>>, vector<1x16xf32>
    %c2 = arith.constant 2 : index
    %c0_4 = arith.constant 0 : index
    %9 = vector.load %arg7[%c2, %c0_4] : memref<4x16xf32, #tpu.memory_space<vmem>>, vector<1x16xf32>
    %c3 = arith.constant 3 : index
    %c0_5 = arith.constant 0 : index
    %10 = vector.load %arg7[%c3, %c0_5] : memref<4x16xf32, #tpu.memory_space<vmem>>, vector<1x16xf32>
    %cst_6 = arith.constant 0.000000e+00 : f32
    %11 = vector.broadcast %cst_6 : f32 to vector<1x16xf32>
    %12 = arith.cmpf oeq, %7, %11 : vector<1x16xf32>
    %cst_7 = arith.constant 0.000000e+00 : f32
    %13 = vector.broadcast %cst_7 : f32 to vector<1x16xf32>
    %14 = arith.cmpf oeq, %8, %13 : vector<1x16xf32>
    %cst_8 = arith.constant 0.000000e+00 : f32
    %15 = vector.broadcast %cst_8 : f32 to vector<1x16xf32>
    %16 = arith.cmpf oeq, %9, %15 : vector<1x16xf32>
    %cst_9 = arith.constant 0.000000e+00 : f32
    %17 = vector.broadcast %cst_9 : f32 to vector<1x16xf32>
    %18 = arith.cmpf oeq, %10, %17 : vector<1x16xf32>
    %cst_10 = arith.constant 2.000000e+00 : f32
    %19 = vector.broadcast %cst_10 : f32 to vector<1x16xf32>
    %20 = arith.mulf %19, %7 : vector<1x16xf32>
    %cst_11 = arith.constant 1.000000e+00 : f32
    %21 = vector.broadcast %cst_11 : f32 to vector<1x16xf32>
    %22 = arith.subf %20, %21 : vector<1x16xf32>
    %cst_12 = arith.constant 2.000000e+00 : f32
    %23 = vector.broadcast %cst_12 : f32 to vector<1x16xf32>
    %24 = arith.mulf %23, %8 : vector<1x16xf32>
    %cst_13 = arith.constant 1.000000e+00 : f32
    %25 = vector.broadcast %cst_13 : f32 to vector<1x16xf32>
    %26 = arith.subf %24, %25 : vector<1x16xf32>
    %cst_14 = arith.constant 2.000000e+00 : f32
    %27 = vector.broadcast %cst_14 : f32 to vector<1x16xf32>
    %28 = arith.mulf %27, %9 : vector<1x16xf32>
    %cst_15 = arith.constant 1.000000e+00 : f32
    %29 = vector.broadcast %cst_15 : f32 to vector<1x16xf32>
    %30 = arith.subf %28, %29 : vector<1x16xf32>
    %cst_16 = arith.constant 2.000000e+00 : f32
    %31 = vector.broadcast %cst_16 : f32 to vector<1x16xf32>
    %32 = arith.mulf %31, %10 : vector<1x16xf32>
    %cst_17 = arith.constant 1.000000e+00 : f32
    %33 = vector.broadcast %cst_17 : f32 to vector<1x16xf32>
    %34 = arith.subf %32, %33 : vector<1x16xf32>
    %c0_18 = arith.constant 0 : index
    %c0_19 = arith.constant 0 : index
    %c0_20 = arith.constant 0 : index
    %35 = vector.load %arg1[%c0_18, %c0_19, %c0_20] : memref<2x8x4xf32, #tpu.memory_space<vmem>>, vector<1x8x4xf32>
    %36 = vector.shape_cast %35 : vector<1x8x4xf32> to vector<8x4xf32>
    %37 = math.cos %36 : vector<8x4xf32>
    %38 = math.sin %36 : vector<8x4xf32>
    %39 = vector.extract_strided_slice %37 {offsets = [0, 0], sizes = [8, 1], strides = [1, 1]} : vector<8x4xf32> to vector<8x1xf32>
    %40 = vector.extract_strided_slice %38 {offsets = [0, 0], sizes = [8, 1], strides = [1, 1]} : vector<8x4xf32> to vector<8x1xf32>
    %41 = vector.extract_strided_slice %5 {offsets = [0, 8], sizes = [8, 8], strides = [1, 1]} : vector<8x16xf32> to vector<8x8xf32>
    %42 = vector.extract_strided_slice %5 {offsets = [0, 0], sizes = [8, 8], strides = [1, 1]} : vector<8x16xf32> to vector<8x8xf32>
    %43 = tpu.concatenate %41, %42 in 1 : vector<8x8xf32>, vector<8x8xf32> -> vector<8x16xf32>
    %44 = vector.extract_strided_slice %5 {offsets = [0, 8], sizes = [8, 8], strides = [1, 1]} : vector<8x16xf32> to vector<8x8xf32>
    %45 = vector.extract_strided_slice %5 {offsets = [0, 0], sizes = [8, 8], strides = [1, 1]} : vector<8x16xf32> to vector<8x8xf32>
    %46 = tpu.concatenate %44, %45 in 1 : vector<8x8xf32>, vector<8x8xf32> -> vector<8x16xf32>
    %47 = vector.shape_cast %12 : vector<1x16xi1> to vector<1x16xi1>
    %48 = vector.broadcast %47 : vector<1x16xi1> to vector<8x16xi1>
    %49 = arith.select %48, %43, %46 : vector<8x16xi1>, vector<8x16xf32>
    %50 = vector.extract_strided_slice %6 {offsets = [0, 8], sizes = [8, 8], strides = [1, 1]} : vector<8x16xf32> to vector<8x8xf32>
    %51 = vector.extract_strided_slice %6 {offsets = [0, 0], sizes = [8, 8], strides = [1, 1]} : vector<8x16xf32> to vector<8x8xf32>
    %52 = tpu.concatenate %50, %51 in 1 : vector<8x8xf32>, vector<8x8xf32> -> vector<8x16xf32>
    %53 = vector.extract_strided_slice %6 {offsets = [0, 8], sizes = [8, 8], strides = [1, 1]} : vector<8x16xf32> to vector<8x8xf32>
    %54 = vector.extract_strided_slice %6 {offsets = [0, 0], sizes = [8, 8], strides = [1, 1]} : vector<8x16xf32> to vector<8x8xf32>
    %55 = tpu.concatenate %53, %54 in 1 : vector<8x8xf32>, vector<8x8xf32> -> vector<8x16xf32>
    %56 = vector.shape_cast %12 : vector<1x16xi1> to vector<1x16xi1>
    %57 = vector.broadcast %56 : vector<1x16xi1> to vector<8x16xi1>
    %58 = arith.select %57, %52, %55 : vector<8x16xi1>, vector<8x16xf32>
    %59 = vector.broadcast %39 : vector<8x1xf32> to vector<8x16xf32>
    %60 = arith.mulf %59, %5 : vector<8x16xf32>
    %61 = vector.broadcast %40 : vector<8x1xf32> to vector<8x16xf32>
    %62 = arith.mulf %61, %58 : vector<8x16xf32>
    %63 = arith.addf %60, %62 : vector<8x16xf32>
    %64 = vector.broadcast %39 : vector<8x1xf32> to vector<8x16xf32>
    %65 = arith.mulf %64, %6 : vector<8x16xf32>
    %66 = vector.broadcast %40 : vector<8x1xf32> to vector<8x16xf32>
    %67 = arith.mulf %66, %49 : vector<8x16xf32>
    %68 = arith.subf %65, %67 : vector<8x16xf32>
    %69 = vector.extract_strided_slice %37 {offsets = [0, 1], sizes = [8, 1], strides = [1, 1]} : vector<8x4xf32> to vector<8x1xf32>
    %70 = vector.extract_strided_slice %38 {offsets = [0, 1], sizes = [8, 1], strides = [1, 1]} : vector<8x4xf32> to vector<8x1xf32>
    %71 = vector.extract_strided_slice %63 {offsets = [0, 4], sizes = [8, 12], strides = [1, 1]} : vector<8x16xf32> to vector<8x12xf32>
    %72 = vector.extract_strided_slice %63 {offsets = [0, 0], sizes = [8, 4], strides = [1, 1]} : vector<8x16xf32> to vector<8x4xf32>
    %73 = tpu.concatenate %71, %72 in 1 : vector<8x12xf32>, vector<8x4xf32> -> vector<8x16xf32>
    %74 = vector.extract_strided_slice %63 {offsets = [0, 12], sizes = [8, 4], strides = [1, 1]} : vector<8x16xf32> to vector<8x4xf32>
    %75 = vector.extract_strided_slice %63 {offsets = [0, 0], sizes = [8, 12], strides = [1, 1]} : vector<8x16xf32> to vector<8x12xf32>
    %76 = tpu.concatenate %74, %75 in 1 : vector<8x4xf32>, vector<8x12xf32> -> vector<8x16xf32>
    %77 = vector.shape_cast %14 : vector<1x16xi1> to vector<1x16xi1>
    %78 = vector.broadcast %77 : vector<1x16xi1> to vector<8x16xi1>
    %79 = arith.select %78, %73, %76 : vector<8x16xi1>, vector<8x16xf32>
    %80 = vector.extract_strided_slice %68 {offsets = [0, 4], sizes = [8, 12], strides = [1, 1]} : vector<8x16xf32> to vector<8x12xf32>
    %81 = vector.extract_strided_slice %68 {offsets = [0, 0], sizes = [8, 4], strides = [1, 1]} : vector<8x16xf32> to vector<8x4xf32>
    %82 = tpu.concatenate %80, %81 in 1 : vector<8x12xf32>, vector<8x4xf32> -> vector<8x16xf32>
    %83 = vector.extract_strided_slice %68 {offsets = [0, 12], sizes = [8, 4], strides = [1, 1]} : vector<8x16xf32> to vector<8x4xf32>
    %84 = vector.extract_strided_slice %68 {offsets = [0, 0], sizes = [8, 12], strides = [1, 1]} : vector<8x16xf32> to vector<8x12xf32>
    %85 = tpu.concatenate %83, %84 in 1 : vector<8x4xf32>, vector<8x12xf32> -> vector<8x16xf32>
    %86 = vector.shape_cast %14 : vector<1x16xi1> to vector<1x16xi1>
    %87 = vector.broadcast %86 : vector<1x16xi1> to vector<8x16xi1>
    %88 = arith.select %87, %82, %85 : vector<8x16xi1>, vector<8x16xf32>
    %89 = vector.broadcast %69 : vector<8x1xf32> to vector<8x16xf32>
    %90 = arith.mulf %89, %63 : vector<8x16xf32>
    %91 = vector.broadcast %70 : vector<8x1xf32> to vector<8x16xf32>
    %92 = arith.mulf %91, %88 : vector<8x16xf32>
    %93 = arith.addf %90, %92 : vector<8x16xf32>
    %94 = vector.broadcast %69 : vector<8x1xf32> to vector<8x16xf32>
    %95 = arith.mulf %94, %68 : vector<8x16xf32>
    %96 = vector.broadcast %70 : vector<8x1xf32> to vector<8x16xf32>
    %97 = arith.mulf %96, %79 : vector<8x16xf32>
    %98 = arith.subf %95, %97 : vector<8x16xf32>
    %99 = vector.extract_strided_slice %37 {offsets = [0, 2], sizes = [8, 1], strides = [1, 1]} : vector<8x4xf32> to vector<8x1xf32>
    %100 = vector.extract_strided_slice %38 {offsets = [0, 2], sizes = [8, 1], strides = [1, 1]} : vector<8x4xf32> to vector<8x1xf32>
    %101 = vector.extract_strided_slice %93 {offsets = [0, 2], sizes = [8, 14], strides = [1, 1]} : vector<8x16xf32> to vector<8x14xf32>
    %102 = vector.extract_strided_slice %93 {offsets = [0, 0], sizes = [8, 2], strides = [1, 1]} : vector<8x16xf32> to vector<8x2xf32>
    %103 = tpu.concatenate %101, %102 in 1 : vector<8x14xf32>, vector<8x2xf32> -> vector<8x16xf32>
    %104 = vector.extract_strided_slice %93 {offsets = [0, 14], sizes = [8, 2], strides = [1, 1]} : vector<8x16xf32> to vector<8x2xf32>
    %105 = vector.extract_strided_slice %93 {offsets = [0, 0], sizes = [8, 14], strides = [1, 1]} : vector<8x16xf32> to vector<8x14xf32>
    %106 = tpu.concatenate %104, %105 in 1 : vector<8x2xf32>, vector<8x14xf32> -> vector<8x16xf32>
    %107 = vector.shape_cast %16 : vector<1x16xi1> to vector<1x16xi1>
    %108 = vector.broadcast %107 : vector<1x16xi1> to vector<8x16xi1>
    %109 = arith.select %108, %103, %106 : vector<8x16xi1>, vector<8x16xf32>
    %110 = vector.extract_strided_slice %98 {offsets = [0, 2], sizes = [8, 14], strides = [1, 1]} : vector<8x16xf32> to vector<8x14xf32>
    %111 = vector.extract_strided_slice %98 {offsets = [0, 0], sizes = [8, 2], strides = [1, 1]} : vector<8x16xf32> to vector<8x2xf32>
    %112 = tpu.concatenate %110, %111 in 1 : vector<8x14xf32>, vector<8x2xf32> -> vector<8x16xf32>
    %113 = vector.extract_strided_slice %98 {offsets = [0, 14], sizes = [8, 2], strides = [1, 1]} : vector<8x16xf32> to vector<8x2xf32>
    %114 = vector.extract_strided_slice %98 {offsets = [0, 0], sizes = [8, 14], strides = [1, 1]} : vector<8x16xf32> to vector<8x14xf32>
    %115 = tpu.concatenate %113, %114 in 1 : vector<8x2xf32>, vector<8x14xf32> -> vector<8x16xf32>
    %116 = vector.shape_cast %16 : vector<1x16xi1> to vector<1x16xi1>
    %117 = vector.broadcast %116 : vector<1x16xi1> to vector<8x16xi1>
    %118 = arith.select %117, %112, %115 : vector<8x16xi1>, vector<8x16xf32>
    %119 = vector.broadcast %99 : vector<8x1xf32> to vector<8x16xf32>
    %120 = arith.mulf %119, %93 : vector<8x16xf32>
    %121 = vector.broadcast %100 : vector<8x1xf32> to vector<8x16xf32>
    %122 = arith.mulf %121, %118 : vector<8x16xf32>
    %123 = arith.addf %120, %122 : vector<8x16xf32>
    %124 = vector.broadcast %99 : vector<8x1xf32> to vector<8x16xf32>
    %125 = arith.mulf %124, %98 : vector<8x16xf32>
    %126 = vector.broadcast %100 : vector<8x1xf32> to vector<8x16xf32>
    %127 = arith.mulf %126, %109 : vector<8x16xf32>
    %128 = arith.subf %125, %127 : vector<8x16xf32>
    %129 = vector.extract_strided_slice %37 {offsets = [0, 3], sizes = [8, 1], strides = [1, 1]} : vector<8x4xf32> to vector<8x1xf32>
    %130 = vector.extract_strided_slice %38 {offsets = [0, 3], sizes = [8, 1], strides = [1, 1]} : vector<8x4xf32> to vector<8x1xf32>
    %131 = vector.extract_strided_slice %123 {offsets = [0, 1], sizes = [8, 15], strides = [1, 1]} : vector<8x16xf32> to vector<8x15xf32>
    %132 = vector.extract_strided_slice %123 {offsets = [0, 0], sizes = [8, 1], strides = [1, 1]} : vector<8x16xf32> to vector<8x1xf32>
    %133 = tpu.concatenate %131, %132 in 1 : vector<8x15xf32>, vector<8x1xf32> -> vector<8x16xf32>
    %134 = vector.extract_strided_slice %123 {offsets = [0, 15], sizes = [8, 1], strides = [1, 1]} : vector<8x16xf32> to vector<8x1xf32>
    %135 = vector.extract_strided_slice %123 {offsets = [0, 0], sizes = [8, 15], strides = [1, 1]} : vector<8x16xf32> to vector<8x15xf32>
    %136 = tpu.concatenate %134, %135 in 1 : vector<8x1xf32>, vector<8x15xf32> -> vector<8x16xf32>
    %137 = vector.shape_cast %18 : vector<1x16xi1> to vector<1x16xi1>
    %138 = vector.broadcast %137 : vector<1x16xi1> to vector<8x16xi1>
    %139 = arith.select %138, %133, %136 : vector<8x16xi1>, vector<8x16xf32>
    %140 = vector.extract_strided_slice %128 {offsets = [0, 1], sizes = [8, 15], strides = [1, 1]} : vector<8x16xf32> to vector<8x15xf32>
    %141 = vector.extract_strided_slice %128 {offsets = [0, 0], sizes = [8, 1], strides = [1, 1]} : vector<8x16xf32> to vector<8x1xf32>
    %142 = tpu.concatenate %140, %141 in 1 : vector<8x15xf32>, vector<8x1xf32> -> vector<8x16xf32>
    %143 = vector.extract_strided_slice %128 {offsets = [0, 15], sizes = [8, 1], strides = [1, 1]} : vector<8x16xf32> to vector<8x1xf32>
    %144 = vector.extract_strided_slice %128 {offsets = [0, 0], sizes = [8, 15], strides = [1, 1]} : vector<8x16xf32> to vector<8x15xf32>
    %145 = tpu.concatenate %143, %144 in 1 : vector<8x1xf32>, vector<8x15xf32> -> vector<8x16xf32>
    %146 = vector.shape_cast %18 : vector<1x16xi1> to vector<1x16xi1>
    %147 = vector.broadcast %146 : vector<1x16xi1> to vector<8x16xi1>
    %148 = arith.select %147, %142, %145 : vector<8x16xi1>, vector<8x16xf32>
    %149 = vector.broadcast %129 : vector<8x1xf32> to vector<8x16xf32>
    %150 = arith.mulf %149, %123 : vector<8x16xf32>
    %151 = vector.broadcast %130 : vector<8x1xf32> to vector<8x16xf32>
    %152 = arith.mulf %151, %148 : vector<8x16xf32>
    %153 = arith.addf %150, %152 : vector<8x16xf32>
    %154 = vector.broadcast %129 : vector<8x1xf32> to vector<8x16xf32>
    %155 = arith.mulf %154, %128 : vector<8x16xf32>
    %156 = vector.broadcast %130 : vector<8x1xf32> to vector<8x16xf32>
    %157 = arith.mulf %156, %139 : vector<8x16xf32>
    %158 = arith.subf %155, %157 : vector<8x16xf32>
    %c0_21 = arith.constant 0 : index
    %c0_22 = arith.constant 0 : index
    %159 = memref.load %arg2[%c0_21, %c0_22] : memref<2x4xf32, #tpu.memory_space<smem>>
    %c0_23 = arith.constant 0 : index
    %c0_24 = arith.constant 0 : index
    %160 = memref.load %arg3[%c0_23, %c0_24] : memref<2x4xf32, #tpu.memory_space<smem>>
    %161 = vector.broadcast %160 : f32 to vector<1x16xf32>
    %162 = arith.mulf %161, %22 : vector<1x16xf32>
    %163 = vector.broadcast %159 : f32 to vector<8x16xf32>
    %164 = arith.mulf %163, %153 : vector<8x16xf32>
    %165 = vector.broadcast %162 : vector<1x16xf32> to vector<8x16xf32>
    %166 = arith.mulf %165, %158 : vector<8x16xf32>
    %167 = arith.subf %164, %166 : vector<8x16xf32>
    %168 = vector.broadcast %162 : vector<1x16xf32> to vector<8x16xf32>
    %169 = arith.mulf %168, %153 : vector<8x16xf32>
    %170 = vector.broadcast %159 : f32 to vector<8x16xf32>
    %171 = arith.mulf %170, %158 : vector<8x16xf32>
    %172 = arith.addf %169, %171 : vector<8x16xf32>
    %c0_25 = arith.constant 0 : index
    %c1_26 = arith.constant 1 : index
    %173 = memref.load %arg2[%c0_25, %c1_26] : memref<2x4xf32, #tpu.memory_space<smem>>
    %c0_27 = arith.constant 0 : index
    %c1_28 = arith.constant 1 : index
    %174 = memref.load %arg3[%c0_27, %c1_28] : memref<2x4xf32, #tpu.memory_space<smem>>
    %175 = vector.broadcast %174 : f32 to vector<1x16xf32>
    %176 = arith.mulf %175, %26 : vector<1x16xf32>
    %177 = vector.broadcast %173 : f32 to vector<8x16xf32>
    %178 = arith.mulf %177, %167 : vector<8x16xf32>
    %179 = vector.broadcast %176 : vector<1x16xf32> to vector<8x16xf32>
    %180 = arith.mulf %179, %172 : vector<8x16xf32>
    %181 = arith.subf %178, %180 : vector<8x16xf32>
    %182 = vector.broadcast %176 : vector<1x16xf32> to vector<8x16xf32>
    %183 = arith.mulf %182, %167 : vector<8x16xf32>
    %184 = vector.broadcast %173 : f32 to vector<8x16xf32>
    %185 = arith.mulf %184, %172 : vector<8x16xf32>
    %186 = arith.addf %183, %185 : vector<8x16xf32>
    %c0_29 = arith.constant 0 : index
    %c2_30 = arith.constant 2 : index
    %187 = memref.load %arg2[%c0_29, %c2_30] : memref<2x4xf32, #tpu.memory_space<smem>>
    %c0_31 = arith.constant 0 : index
    %c2_32 = arith.constant 2 : index
    %188 = memref.load %arg3[%c0_31, %c2_32] : memref<2x4xf32, #tpu.memory_space<smem>>
    %189 = vector.broadcast %188 : f32 to vector<1x16xf32>
    %190 = arith.mulf %189, %30 : vector<1x16xf32>
    %191 = vector.broadcast %187 : f32 to vector<8x16xf32>
    %192 = arith.mulf %191, %181 : vector<8x16xf32>
    %193 = vector.broadcast %190 : vector<1x16xf32> to vector<8x16xf32>
    %194 = arith.mulf %193, %186 : vector<8x16xf32>
    %195 = arith.subf %192, %194 : vector<8x16xf32>
    %196 = vector.broadcast %190 : vector<1x16xf32> to vector<8x16xf32>
    %197 = arith.mulf %196, %181 : vector<8x16xf32>
    %198 = vector.broadcast %187 : f32 to vector<8x16xf32>
    %199 = arith.mulf %198, %186 : vector<8x16xf32>
    %200 = arith.addf %197, %199 : vector<8x16xf32>
    %c0_33 = arith.constant 0 : index
    %c3_34 = arith.constant 3 : index
    %201 = memref.load %arg2[%c0_33, %c3_34] : memref<2x4xf32, #tpu.memory_space<smem>>
    %c0_35 = arith.constant 0 : index
    %c3_36 = arith.constant 3 : index
    %202 = memref.load %arg3[%c0_35, %c3_36] : memref<2x4xf32, #tpu.memory_space<smem>>
    %203 = vector.broadcast %202 : f32 to vector<1x16xf32>
    %204 = arith.mulf %203, %34 : vector<1x16xf32>
    %205 = vector.broadcast %201 : f32 to vector<8x16xf32>
    %206 = arith.mulf %205, %195 : vector<8x16xf32>
    %207 = vector.broadcast %204 : vector<1x16xf32> to vector<8x16xf32>
    %208 = arith.mulf %207, %200 : vector<8x16xf32>
    %209 = arith.subf %206, %208 : vector<8x16xf32>
    %210 = vector.broadcast %204 : vector<1x16xf32> to vector<8x16xf32>
    %211 = arith.mulf %210, %195 : vector<8x16xf32>
    %212 = vector.broadcast %201 : f32 to vector<8x16xf32>
    %213 = arith.mulf %212, %200 : vector<8x16xf32>
    %214 = arith.addf %211, %213 : vector<8x16xf32>
    %c0_37 = arith.constant 0 : index
    %c0_38 = arith.constant 0 : index
    %215 = memref.load %arg4[%c0_37, %c0_38] : memref<2x4xf32, #tpu.memory_space<smem>>
    %c0_39 = arith.constant 0 : index
    %c0_40 = arith.constant 0 : index
    %216 = memref.load %arg5[%c0_39, %c0_40] : memref<2x4xf32, #tpu.memory_space<smem>>
    %217 = vector.broadcast %216 : f32 to vector<1x16xf32>
    %218 = arith.mulf %217, %22 : vector<1x16xf32>
    %219 = vector.extract_strided_slice %209 {offsets = [0, 8], sizes = [8, 8], strides = [1, 1]} : vector<8x16xf32> to vector<8x8xf32>
    %220 = vector.extract_strided_slice %209 {offsets = [0, 0], sizes = [8, 8], strides = [1, 1]} : vector<8x16xf32> to vector<8x8xf32>
    %221 = tpu.concatenate %219, %220 in 1 : vector<8x8xf32>, vector<8x8xf32> -> vector<8x16xf32>
    %222 = vector.extract_strided_slice %209 {offsets = [0, 8], sizes = [8, 8], strides = [1, 1]} : vector<8x16xf32> to vector<8x8xf32>
    %223 = vector.extract_strided_slice %209 {offsets = [0, 0], sizes = [8, 8], strides = [1, 1]} : vector<8x16xf32> to vector<8x8xf32>
    %224 = tpu.concatenate %222, %223 in 1 : vector<8x8xf32>, vector<8x8xf32> -> vector<8x16xf32>
    %225 = vector.shape_cast %12 : vector<1x16xi1> to vector<1x16xi1>
    %226 = vector.broadcast %225 : vector<1x16xi1> to vector<8x16xi1>
    %227 = arith.select %226, %221, %224 : vector<8x16xi1>, vector<8x16xf32>
    %228 = vector.extract_strided_slice %214 {offsets = [0, 8], sizes = [8, 8], strides = [1, 1]} : vector<8x16xf32> to vector<8x8xf32>
    %229 = vector.extract_strided_slice %214 {offsets = [0, 0], sizes = [8, 8], strides = [1, 1]} : vector<8x16xf32> to vector<8x8xf32>
    %230 = tpu.concatenate %228, %229 in 1 : vector<8x8xf32>, vector<8x8xf32> -> vector<8x16xf32>
    %231 = vector.extract_strided_slice %214 {offsets = [0, 8], sizes = [8, 8], strides = [1, 1]} : vector<8x16xf32> to vector<8x8xf32>
    %232 = vector.extract_strided_slice %214 {offsets = [0, 0], sizes = [8, 8], strides = [1, 1]} : vector<8x16xf32> to vector<8x8xf32>
    %233 = tpu.concatenate %231, %232 in 1 : vector<8x8xf32>, vector<8x8xf32> -> vector<8x16xf32>
    %234 = vector.shape_cast %12 : vector<1x16xi1> to vector<1x16xi1>
    %235 = vector.broadcast %234 : vector<1x16xi1> to vector<8x16xi1>
    %236 = arith.select %235, %230, %233 : vector<8x16xi1>, vector<8x16xf32>
    %237 = vector.broadcast %215 : f32 to vector<8x16xf32>
    %238 = arith.mulf %237, %209 : vector<8x16xf32>
    %239 = vector.broadcast %218 : vector<1x16xf32> to vector<8x16xf32>
    %240 = arith.mulf %239, %227 : vector<8x16xf32>
    %241 = arith.addf %238, %240 : vector<8x16xf32>
    %242 = vector.broadcast %215 : f32 to vector<8x16xf32>
    %243 = arith.mulf %242, %214 : vector<8x16xf32>
    %244 = vector.broadcast %218 : vector<1x16xf32> to vector<8x16xf32>
    %245 = arith.mulf %244, %236 : vector<8x16xf32>
    %246 = arith.addf %243, %245 : vector<8x16xf32>
    %c0_41 = arith.constant 0 : index
    %c1_42 = arith.constant 1 : index
    %247 = memref.load %arg4[%c0_41, %c1_42] : memref<2x4xf32, #tpu.memory_space<smem>>
    %c0_43 = arith.constant 0 : index
    %c1_44 = arith.constant 1 : index
    %248 = memref.load %arg5[%c0_43, %c1_44] : memref<2x4xf32, #tpu.memory_space<smem>>
    %249 = vector.broadcast %248 : f32 to vector<1x16xf32>
    %250 = arith.mulf %249, %26 : vector<1x16xf32>
    %251 = vector.extract_strided_slice %241 {offsets = [0, 4], sizes = [8, 12], strides = [1, 1]} : vector<8x16xf32> to vector<8x12xf32>
    %252 = vector.extract_strided_slice %241 {offsets = [0, 0], sizes = [8, 4], strides = [1, 1]} : vector<8x16xf32> to vector<8x4xf32>
    %253 = tpu.concatenate %251, %252 in 1 : vector<8x12xf32>, vector<8x4xf32> -> vector<8x16xf32>
    %254 = vector.extract_strided_slice %241 {offsets = [0, 12], sizes = [8, 4], strides = [1, 1]} : vector<8x16xf32> to vector<8x4xf32>
    %255 = vector.extract_strided_slice %241 {offsets = [0, 0], sizes = [8, 12], strides = [1, 1]} : vector<8x16xf32> to vector<8x12xf32>
    %256 = tpu.concatenate %254, %255 in 1 : vector<8x4xf32>, vector<8x12xf32> -> vector<8x16xf32>
    %257 = vector.shape_cast %14 : vector<1x16xi1> to vector<1x16xi1>
    %258 = vector.broadcast %257 : vector<1x16xi1> to vector<8x16xi1>
    %259 = arith.select %258, %253, %256 : vector<8x16xi1>, vector<8x16xf32>
    %260 = vector.extract_strided_slice %246 {offsets = [0, 4], sizes = [8, 12], strides = [1, 1]} : vector<8x16xf32> to vector<8x12xf32>
    %261 = vector.extract_strided_slice %246 {offsets = [0, 0], sizes = [8, 4], strides = [1, 1]} : vector<8x16xf32> to vector<8x4xf32>
    %262 = tpu.concatenate %260, %261 in 1 : vector<8x12xf32>, vector<8x4xf32> -> vector<8x16xf32>
    %263 = vector.extract_strided_slice %246 {offsets = [0, 12], sizes = [8, 4], strides = [1, 1]} : vector<8x16xf32> to vector<8x4xf32>
    %264 = vector.extract_strided_slice %246 {offsets = [0, 0], sizes = [8, 12], strides = [1, 1]} : vector<8x16xf32> to vector<8x12xf32>
    %265 = tpu.concatenate %263, %264 in 1 : vector<8x4xf32>, vector<8x12xf32> -> vector<8x16xf32>
    %266 = vector.shape_cast %14 : vector<1x16xi1> to vector<1x16xi1>
    %267 = vector.broadcast %266 : vector<1x16xi1> to vector<8x16xi1>
    %268 = arith.select %267, %262, %265 : vector<8x16xi1>, vector<8x16xf32>
    %269 = vector.broadcast %247 : f32 to vector<8x16xf32>
    %270 = arith.mulf %269, %241 : vector<8x16xf32>
    %271 = vector.broadcast %250 : vector<1x16xf32> to vector<8x16xf32>
    %272 = arith.mulf %271, %259 : vector<8x16xf32>
    %273 = arith.addf %270, %272 : vector<8x16xf32>
    %274 = vector.broadcast %247 : f32 to vector<8x16xf32>
    %275 = arith.mulf %274, %246 : vector<8x16xf32>
    %276 = vector.broadcast %250 : vector<1x16xf32> to vector<8x16xf32>
    %277 = arith.mulf %276, %268 : vector<8x16xf32>
    %278 = arith.addf %275, %277 : vector<8x16xf32>
    %c0_45 = arith.constant 0 : index
    %c2_46 = arith.constant 2 : index
    %279 = memref.load %arg4[%c0_45, %c2_46] : memref<2x4xf32, #tpu.memory_space<smem>>
    %c0_47 = arith.constant 0 : index
    %c2_48 = arith.constant 2 : index
    %280 = memref.load %arg5[%c0_47, %c2_48] : memref<2x4xf32, #tpu.memory_space<smem>>
    %281 = vector.broadcast %280 : f32 to vector<1x16xf32>
    %282 = arith.mulf %281, %30 : vector<1x16xf32>
    %283 = vector.extract_strided_slice %273 {offsets = [0, 2], sizes = [8, 14], strides = [1, 1]} : vector<8x16xf32> to vector<8x14xf32>
    %284 = vector.extract_strided_slice %273 {offsets = [0, 0], sizes = [8, 2], strides = [1, 1]} : vector<8x16xf32> to vector<8x2xf32>
    %285 = tpu.concatenate %283, %284 in 1 : vector<8x14xf32>, vector<8x2xf32> -> vector<8x16xf32>
    %286 = vector.extract_strided_slice %273 {offsets = [0, 14], sizes = [8, 2], strides = [1, 1]} : vector<8x16xf32> to vector<8x2xf32>
    %287 = vector.extract_strided_slice %273 {offsets = [0, 0], sizes = [8, 14], strides = [1, 1]} : vector<8x16xf32> to vector<8x14xf32>
    %288 = tpu.concatenate %286, %287 in 1 : vector<8x2xf32>, vector<8x14xf32> -> vector<8x16xf32>
    %289 = vector.shape_cast %16 : vector<1x16xi1> to vector<1x16xi1>
    %290 = vector.broadcast %289 : vector<1x16xi1> to vector<8x16xi1>
    %291 = arith.select %290, %285, %288 : vector<8x16xi1>, vector<8x16xf32>
    %292 = vector.extract_strided_slice %278 {offsets = [0, 2], sizes = [8, 14], strides = [1, 1]} : vector<8x16xf32> to vector<8x14xf32>
    %293 = vector.extract_strided_slice %278 {offsets = [0, 0], sizes = [8, 2], strides = [1, 1]} : vector<8x16xf32> to vector<8x2xf32>
    %294 = tpu.concatenate %292, %293 in 1 : vector<8x14xf32>, vector<8x2xf32> -> vector<8x16xf32>
    %295 = vector.extract_strided_slice %278 {offsets = [0, 14], sizes = [8, 2], strides = [1, 1]} : vector<8x16xf32> to vector<8x2xf32>
    %296 = vector.extract_strided_slice %278 {offsets = [0, 0], sizes = [8, 14], strides = [1, 1]} : vector<8x16xf32> to vector<8x14xf32>
    %297 = tpu.concatenate %295, %296 in 1 : vector<8x2xf32>, vector<8x14xf32> -> vector<8x16xf32>
    %298 = vector.shape_cast %16 : vector<1x16xi1> to vector<1x16xi1>
    %299 = vector.broadcast %298 : vector<1x16xi1> to vector<8x16xi1>
    %300 = arith.select %299, %294, %297 : vector<8x16xi1>, vector<8x16xf32>
    %301 = vector.broadcast %279 : f32 to vector<8x16xf32>
    %302 = arith.mulf %301, %273 : vector<8x16xf32>
    %303 = vector.broadcast %282 : vector<1x16xf32> to vector<8x16xf32>
    %304 = arith.mulf %303, %291 : vector<8x16xf32>
    %305 = arith.addf %302, %304 : vector<8x16xf32>
    %306 = vector.broadcast %279 : f32 to vector<8x16xf32>
    %307 = arith.mulf %306, %278 : vector<8x16xf32>
    %308 = vector.broadcast %282 : vector<1x16xf32> to vector<8x16xf32>
    %309 = arith.mulf %308, %300 : vector<8x16xf32>
    %310 = arith.addf %307, %309 : vector<8x16xf32>
    %c0_49 = arith.constant 0 : index
    %c3_50 = arith.constant 3 : index
    %311 = memref.load %arg4[%c0_49, %c3_50] : memref<2x4xf32, #tpu.memory_space<smem>>
    %c0_51 = arith.constant 0 : index
    %c3_52 = arith.constant 3 : index
    %312 = memref.load %arg5[%c0_51, %c3_52] : memref<2x4xf32, #tpu.memory_space<smem>>
    %313 = vector.broadcast %312 : f32 to vector<1x16xf32>
    %314 = arith.mulf %313, %34 : vector<1x16xf32>
    %315 = vector.extract_strided_slice %305 {offsets = [0, 1], sizes = [8, 15], strides = [1, 1]} : vector<8x16xf32> to vector<8x15xf32>
    %316 = vector.extract_strided_slice %305 {offsets = [0, 0], sizes = [8, 1], strides = [1, 1]} : vector<8x16xf32> to vector<8x1xf32>
    %317 = tpu.concatenate %315, %316 in 1 : vector<8x15xf32>, vector<8x1xf32> -> vector<8x16xf32>
    %318 = vector.extract_strided_slice %305 {offsets = [0, 15], sizes = [8, 1], strides = [1, 1]} : vector<8x16xf32> to vector<8x1xf32>
    %319 = vector.extract_strided_slice %305 {offsets = [0, 0], sizes = [8, 15], strides = [1, 1]} : vector<8x16xf32> to vector<8x15xf32>
    %320 = tpu.concatenate %318, %319 in 1 : vector<8x1xf32>, vector<8x15xf32> -> vector<8x16xf32>
    %321 = vector.shape_cast %18 : vector<1x16xi1> to vector<1x16xi1>
    %322 = vector.broadcast %321 : vector<1x16xi1> to vector<8x16xi1>
    %323 = arith.select %322, %317, %320 : vector<8x16xi1>, vector<8x16xf32>
    %324 = vector.extract_strided_slice %310 {offsets = [0, 1], sizes = [8, 15], strides = [1, 1]} : vector<8x16xf32> to vector<8x15xf32>
    %325 = vector.extract_strided_slice %310 {offsets = [0, 0], sizes = [8, 1], strides = [1, 1]} : vector<8x16xf32> to vector<8x1xf32>
    %326 = tpu.concatenate %324, %325 in 1 : vector<8x15xf32>, vector<8x1xf32> -> vector<8x16xf32>
    %327 = vector.extract_strided_slice %310 {offsets = [0, 15], sizes = [8, 1], strides = [1, 1]} : vector<8x16xf32> to vector<8x1xf32>
    %328 = vector.extract_strided_slice %310 {offsets = [0, 0], sizes = [8, 15], strides = [1, 1]} : vector<8x16xf32> to vector<8x15xf32>
    %329 = tpu.concatenate %327, %328 in 1 : vector<8x1xf32>, vector<8x15xf32> -> vector<8x16xf32>
    %330 = vector.shape_cast %18 : vector<1x16xi1> to vector<1x16xi1>
    %331 = vector.broadcast %330 : vector<1x16xi1> to vector<8x16xi1>
    %332 = arith.select %331, %326, %329 : vector<8x16xi1>, vector<8x16xf32>
    %333 = vector.broadcast %311 : f32 to vector<8x16xf32>
    %334 = arith.mulf %333, %305 : vector<8x16xf32>
    %335 = vector.broadcast %314 : vector<1x16xf32> to vector<8x16xf32>
    %336 = arith.mulf %335, %323 : vector<8x16xf32>
    %337 = arith.addf %334, %336 : vector<8x16xf32>
    %338 = vector.broadcast %311 : f32 to vector<8x16xf32>
    %339 = arith.mulf %338, %310 : vector<8x16xf32>
    %340 = vector.broadcast %314 : vector<1x16xf32> to vector<8x16xf32>
    %341 = arith.mulf %340, %332 : vector<8x16xf32>
    %342 = arith.addf %339, %341 : vector<8x16xf32>
    %c0_53 = arith.constant 0 : index
    %c0_54 = arith.constant 0 : index
    %343 = vector.load %arg8[%c0_53, %c0_54] : memref<1x16xf32, #tpu.memory_space<vmem>>, vector<1x16xf32>
    %344 = vector.broadcast %343 : vector<1x16xf32> to vector<8x16xf32>
    %345 = arith.mulf %337, %344 : vector<8x16xf32>
    %346 = vector.broadcast %343 : vector<1x16xf32> to vector<8x16xf32>
    %347 = arith.mulf %342, %346 : vector<8x16xf32>
    %c1_55 = arith.constant 1 : index
    %c0_56 = arith.constant 0 : index
    %c0_57 = arith.constant 0 : index
    %348 = vector.load %arg1[%c1_55, %c0_56, %c0_57] : memref<2x8x4xf32, #tpu.memory_space<vmem>>, vector<1x8x4xf32>
    %349 = vector.shape_cast %348 : vector<1x8x4xf32> to vector<8x4xf32>
    %350 = math.cos %349 : vector<8x4xf32>
    %351 = math.sin %349 : vector<8x4xf32>
    %352 = vector.extract_strided_slice %350 {offsets = [0, 0], sizes = [8, 1], strides = [1, 1]} : vector<8x4xf32> to vector<8x1xf32>
    %353 = vector.extract_strided_slice %351 {offsets = [0, 0], sizes = [8, 1], strides = [1, 1]} : vector<8x4xf32> to vector<8x1xf32>
    %354 = vector.extract_strided_slice %345 {offsets = [0, 8], sizes = [8, 8], strides = [1, 1]} : vector<8x16xf32> to vector<8x8xf32>
    %355 = vector.extract_strided_slice %345 {offsets = [0, 0], sizes = [8, 8], strides = [1, 1]} : vector<8x16xf32> to vector<8x8xf32>
    %356 = tpu.concatenate %354, %355 in 1 : vector<8x8xf32>, vector<8x8xf32> -> vector<8x16xf32>
    %357 = vector.extract_strided_slice %345 {offsets = [0, 8], sizes = [8, 8], strides = [1, 1]} : vector<8x16xf32> to vector<8x8xf32>
    %358 = vector.extract_strided_slice %345 {offsets = [0, 0], sizes = [8, 8], strides = [1, 1]} : vector<8x16xf32> to vector<8x8xf32>
    %359 = tpu.concatenate %357, %358 in 1 : vector<8x8xf32>, vector<8x8xf32> -> vector<8x16xf32>
    %360 = vector.shape_cast %12 : vector<1x16xi1> to vector<1x16xi1>
    %361 = vector.broadcast %360 : vector<1x16xi1> to vector<8x16xi1>
    %362 = arith.select %361, %356, %359 : vector<8x16xi1>, vector<8x16xf32>
    %363 = vector.extract_strided_slice %347 {offsets = [0, 8], sizes = [8, 8], strides = [1, 1]} : vector<8x16xf32> to vector<8x8xf32>
    %364 = vector.extract_strided_slice %347 {offsets = [0, 0], sizes = [8, 8], strides = [1, 1]} : vector<8x16xf32> to vector<8x8xf32>
    %365 = tpu.concatenate %363, %364 in 1 : vector<8x8xf32>, vector<8x8xf32> -> vector<8x16xf32>
    %366 = vector.extract_strided_slice %347 {offsets = [0, 8], sizes = [8, 8], strides = [1, 1]} : vector<8x16xf32> to vector<8x8xf32>
    %367 = vector.extract_strided_slice %347 {offsets = [0, 0], sizes = [8, 8], strides = [1, 1]} : vector<8x16xf32> to vector<8x8xf32>
    %368 = tpu.concatenate %366, %367 in 1 : vector<8x8xf32>, vector<8x8xf32> -> vector<8x16xf32>
    %369 = vector.shape_cast %12 : vector<1x16xi1> to vector<1x16xi1>
    %370 = vector.broadcast %369 : vector<1x16xi1> to vector<8x16xi1>
    %371 = arith.select %370, %365, %368 : vector<8x16xi1>, vector<8x16xf32>
    %372 = vector.broadcast %352 : vector<8x1xf32> to vector<8x16xf32>
    %373 = arith.mulf %372, %345 : vector<8x16xf32>
    %374 = vector.broadcast %353 : vector<8x1xf32> to vector<8x16xf32>
    %375 = arith.mulf %374, %371 : vector<8x16xf32>
    %376 = arith.addf %373, %375 : vector<8x16xf32>
    %377 = vector.broadcast %352 : vector<8x1xf32> to vector<8x16xf32>
    %378 = arith.mulf %377, %347 : vector<8x16xf32>
    %379 = vector.broadcast %353 : vector<8x1xf32> to vector<8x16xf32>
    %380 = arith.mulf %379, %362 : vector<8x16xf32>
    %381 = arith.subf %378, %380 : vector<8x16xf32>
    %382 = vector.extract_strided_slice %350 {offsets = [0, 1], sizes = [8, 1], strides = [1, 1]} : vector<8x4xf32> to vector<8x1xf32>
    %383 = vector.extract_strided_slice %351 {offsets = [0, 1], sizes = [8, 1], strides = [1, 1]} : vector<8x4xf32> to vector<8x1xf32>
    %384 = vector.extract_strided_slice %376 {offsets = [0, 4], sizes = [8, 12], strides = [1, 1]} : vector<8x16xf32> to vector<8x12xf32>
    %385 = vector.extract_strided_slice %376 {offsets = [0, 0], sizes = [8, 4], strides = [1, 1]} : vector<8x16xf32> to vector<8x4xf32>
    %386 = tpu.concatenate %384, %385 in 1 : vector<8x12xf32>, vector<8x4xf32> -> vector<8x16xf32>
    %387 = vector.extract_strided_slice %376 {offsets = [0, 12], sizes = [8, 4], strides = [1, 1]} : vector<8x16xf32> to vector<8x4xf32>
    %388 = vector.extract_strided_slice %376 {offsets = [0, 0], sizes = [8, 12], strides = [1, 1]} : vector<8x16xf32> to vector<8x12xf32>
    %389 = tpu.concatenate %387, %388 in 1 : vector<8x4xf32>, vector<8x12xf32> -> vector<8x16xf32>
    %390 = vector.shape_cast %14 : vector<1x16xi1> to vector<1x16xi1>
    %391 = vector.broadcast %390 : vector<1x16xi1> to vector<8x16xi1>
    %392 = arith.select %391, %386, %389 : vector<8x16xi1>, vector<8x16xf32>
    %393 = vector.extract_strided_slice %381 {offsets = [0, 4], sizes = [8, 12], strides = [1, 1]} : vector<8x16xf32> to vector<8x12xf32>
    %394 = vector.extract_strided_slice %381 {offsets = [0, 0], sizes = [8, 4], strides = [1, 1]} : vector<8x16xf32> to vector<8x4xf32>
    %395 = tpu.concatenate %393, %394 in 1 : vector<8x12xf32>, vector<8x4xf32> -> vector<8x16xf32>
    %396 = vector.extract_strided_slice %381 {offsets = [0, 12], sizes = [8, 4], strides = [1, 1]} : vector<8x16xf32> to vector<8x4xf32>
    %397 = vector.extract_strided_slice %381 {offsets = [0, 0], sizes = [8, 12], strides = [1, 1]} : vector<8x16xf32> to vector<8x12xf32>
    %398 = tpu.concatenate %396, %397 in 1 : vector<8x4xf32>, vector<8x12xf32> -> vector<8x16xf32>
    %399 = vector.shape_cast %14 : vector<1x16xi1> to vector<1x16xi1>
    %400 = vector.broadcast %399 : vector<1x16xi1> to vector<8x16xi1>
    %401 = arith.select %400, %395, %398 : vector<8x16xi1>, vector<8x16xf32>
    %402 = vector.broadcast %382 : vector<8x1xf32> to vector<8x16xf32>
    %403 = arith.mulf %402, %376 : vector<8x16xf32>
    %404 = vector.broadcast %383 : vector<8x1xf32> to vector<8x16xf32>
    %405 = arith.mulf %404, %401 : vector<8x16xf32>
    %406 = arith.addf %403, %405 : vector<8x16xf32>
    %407 = vector.broadcast %382 : vector<8x1xf32> to vector<8x16xf32>
    %408 = arith.mulf %407, %381 : vector<8x16xf32>
    %409 = vector.broadcast %383 : vector<8x1xf32> to vector<8x16xf32>
    %410 = arith.mulf %409, %392 : vector<8x16xf32>
    %411 = arith.subf %408, %410 : vector<8x16xf32>
    %412 = vector.extract_strided_slice %350 {offsets = [0, 2], sizes = [8, 1], strides = [1, 1]} : vector<8x4xf32> to vector<8x1xf32>
    %413 = vector.extract_strided_slice %351 {offsets = [0, 2], sizes = [8, 1], strides = [1, 1]} : vector<8x4xf32> to vector<8x1xf32>
    %414 = vector.extract_strided_slice %406 {offsets = [0, 2], sizes = [8, 14], strides = [1, 1]} : vector<8x16xf32> to vector<8x14xf32>
    %415 = vector.extract_strided_slice %406 {offsets = [0, 0], sizes = [8, 2], strides = [1, 1]} : vector<8x16xf32> to vector<8x2xf32>
    %416 = tpu.concatenate %414, %415 in 1 : vector<8x14xf32>, vector<8x2xf32> -> vector<8x16xf32>
    %417 = vector.extract_strided_slice %406 {offsets = [0, 14], sizes = [8, 2], strides = [1, 1]} : vector<8x16xf32> to vector<8x2xf32>
    %418 = vector.extract_strided_slice %406 {offsets = [0, 0], sizes = [8, 14], strides = [1, 1]} : vector<8x16xf32> to vector<8x14xf32>
    %419 = tpu.concatenate %417, %418 in 1 : vector<8x2xf32>, vector<8x14xf32> -> vector<8x16xf32>
    %420 = vector.shape_cast %16 : vector<1x16xi1> to vector<1x16xi1>
    %421 = vector.broadcast %420 : vector<1x16xi1> to vector<8x16xi1>
    %422 = arith.select %421, %416, %419 : vector<8x16xi1>, vector<8x16xf32>
    %423 = vector.extract_strided_slice %411 {offsets = [0, 2], sizes = [8, 14], strides = [1, 1]} : vector<8x16xf32> to vector<8x14xf32>
    %424 = vector.extract_strided_slice %411 {offsets = [0, 0], sizes = [8, 2], strides = [1, 1]} : vector<8x16xf32> to vector<8x2xf32>
    %425 = tpu.concatenate %423, %424 in 1 : vector<8x14xf32>, vector<8x2xf32> -> vector<8x16xf32>
    %426 = vector.extract_strided_slice %411 {offsets = [0, 14], sizes = [8, 2], strides = [1, 1]} : vector<8x16xf32> to vector<8x2xf32>
    %427 = vector.extract_strided_slice %411 {offsets = [0, 0], sizes = [8, 14], strides = [1, 1]} : vector<8x16xf32> to vector<8x14xf32>
    %428 = tpu.concatenate %426, %427 in 1 : vector<8x2xf32>, vector<8x14xf32> -> vector<8x16xf32>
    %429 = vector.shape_cast %16 : vector<1x16xi1> to vector<1x16xi1>
    %430 = vector.broadcast %429 : vector<1x16xi1> to vector<8x16xi1>
    %431 = arith.select %430, %425, %428 : vector<8x16xi1>, vector<8x16xf32>
    %432 = vector.broadcast %412 : vector<8x1xf32> to vector<8x16xf32>
    %433 = arith.mulf %432, %406 : vector<8x16xf32>
    %434 = vector.broadcast %413 : vector<8x1xf32> to vector<8x16xf32>
    %435 = arith.mulf %434, %431 : vector<8x16xf32>
    %436 = arith.addf %433, %435 : vector<8x16xf32>
    %437 = vector.broadcast %412 : vector<8x1xf32> to vector<8x16xf32>
    %438 = arith.mulf %437, %411 : vector<8x16xf32>
    %439 = vector.broadcast %413 : vector<8x1xf32> to vector<8x16xf32>
    %440 = arith.mulf %439, %422 : vector<8x16xf32>
    %441 = arith.subf %438, %440 : vector<8x16xf32>
    %442 = vector.extract_strided_slice %350 {offsets = [0, 3], sizes = [8, 1], strides = [1, 1]} : vector<8x4xf32> to vector<8x1xf32>
    %443 = vector.extract_strided_slice %351 {offsets = [0, 3], sizes = [8, 1], strides = [1, 1]} : vector<8x4xf32> to vector<8x1xf32>
    %444 = vector.extract_strided_slice %436 {offsets = [0, 1], sizes = [8, 15], strides = [1, 1]} : vector<8x16xf32> to vector<8x15xf32>
    %445 = vector.extract_strided_slice %436 {offsets = [0, 0], sizes = [8, 1], strides = [1, 1]} : vector<8x16xf32> to vector<8x1xf32>
    %446 = tpu.concatenate %444, %445 in 1 : vector<8x15xf32>, vector<8x1xf32> -> vector<8x16xf32>
    %447 = vector.extract_strided_slice %436 {offsets = [0, 15], sizes = [8, 1], strides = [1, 1]} : vector<8x16xf32> to vector<8x1xf32>
    %448 = vector.extract_strided_slice %436 {offsets = [0, 0], sizes = [8, 15], strides = [1, 1]} : vector<8x16xf32> to vector<8x15xf32>
    %449 = tpu.concatenate %447, %448 in 1 : vector<8x1xf32>, vector<8x15xf32> -> vector<8x16xf32>
    %450 = vector.shape_cast %18 : vector<1x16xi1> to vector<1x16xi1>
    %451 = vector.broadcast %450 : vector<1x16xi1> to vector<8x16xi1>
    %452 = arith.select %451, %446, %449 : vector<8x16xi1>, vector<8x16xf32>
    %453 = vector.extract_strided_slice %441 {offsets = [0, 1], sizes = [8, 15], strides = [1, 1]} : vector<8x16xf32> to vector<8x15xf32>
    %454 = vector.extract_strided_slice %441 {offsets = [0, 0], sizes = [8, 1], strides = [1, 1]} : vector<8x16xf32> to vector<8x1xf32>
    %455 = tpu.concatenate %453, %454 in 1 : vector<8x15xf32>, vector<8x1xf32> -> vector<8x16xf32>
    %456 = vector.extract_strided_slice %441 {offsets = [0, 15], sizes = [8, 1], strides = [1, 1]} : vector<8x16xf32> to vector<8x1xf32>
    %457 = vector.extract_strided_slice %441 {offsets = [0, 0], sizes = [8, 15], strides = [1, 1]} : vector<8x16xf32> to vector<8x15xf32>
    %458 = tpu.concatenate %456, %457 in 1 : vector<8x1xf32>, vector<8x15xf32> -> vector<8x16xf32>
    %459 = vector.shape_cast %18 : vector<1x16xi1> to vector<1x16xi1>
    %460 = vector.broadcast %459 : vector<1x16xi1> to vector<8x16xi1>
    %461 = arith.select %460, %455, %458 : vector<8x16xi1>, vector<8x16xf32>
    %462 = vector.broadcast %442 : vector<8x1xf32> to vector<8x16xf32>
    %463 = arith.mulf %462, %436 : vector<8x16xf32>
    %464 = vector.broadcast %443 : vector<8x1xf32> to vector<8x16xf32>
    %465 = arith.mulf %464, %461 : vector<8x16xf32>
    %466 = arith.addf %463, %465 : vector<8x16xf32>
    %467 = vector.broadcast %442 : vector<8x1xf32> to vector<8x16xf32>
    %468 = arith.mulf %467, %441 : vector<8x16xf32>
    %469 = vector.broadcast %443 : vector<8x1xf32> to vector<8x16xf32>
    %470 = arith.mulf %469, %452 : vector<8x16xf32>
    %471 = arith.subf %468, %470 : vector<8x16xf32>
    %c1_58 = arith.constant 1 : index
    %c0_59 = arith.constant 0 : index
    %472 = memref.load %arg2[%c1_58, %c0_59] : memref<2x4xf32, #tpu.memory_space<smem>>
    %c1_60 = arith.constant 1 : index
    %c0_61 = arith.constant 0 : index
    %473 = memref.load %arg3[%c1_60, %c0_61] : memref<2x4xf32, #tpu.memory_space<smem>>
    %474 = vector.broadcast %473 : f32 to vector<1x16xf32>
    %475 = arith.mulf %474, %22 : vector<1x16xf32>
    %476 = vector.broadcast %472 : f32 to vector<8x16xf32>
    %477 = arith.mulf %476, %466 : vector<8x16xf32>
    %478 = vector.broadcast %475 : vector<1x16xf32> to vector<8x16xf32>
    %479 = arith.mulf %478, %471 : vector<8x16xf32>
    %480 = arith.subf %477, %479 : vector<8x16xf32>
    %481 = vector.broadcast %475 : vector<1x16xf32> to vector<8x16xf32>
    %482 = arith.mulf %481, %466 : vector<8x16xf32>
    %483 = vector.broadcast %472 : f32 to vector<8x16xf32>
    %484 = arith.mulf %483, %471 : vector<8x16xf32>
    %485 = arith.addf %482, %484 : vector<8x16xf32>
    %c1_62 = arith.constant 1 : index
    %c1_63 = arith.constant 1 : index
    %486 = memref.load %arg2[%c1_62, %c1_63] : memref<2x4xf32, #tpu.memory_space<smem>>
    %c1_64 = arith.constant 1 : index
    %c1_65 = arith.constant 1 : index
    %487 = memref.load %arg3[%c1_64, %c1_65] : memref<2x4xf32, #tpu.memory_space<smem>>
    %488 = vector.broadcast %487 : f32 to vector<1x16xf32>
    %489 = arith.mulf %488, %26 : vector<1x16xf32>
    %490 = vector.broadcast %486 : f32 to vector<8x16xf32>
    %491 = arith.mulf %490, %480 : vector<8x16xf32>
    %492 = vector.broadcast %489 : vector<1x16xf32> to vector<8x16xf32>
    %493 = arith.mulf %492, %485 : vector<8x16xf32>
    %494 = arith.subf %491, %493 : vector<8x16xf32>
    %495 = vector.broadcast %489 : vector<1x16xf32> to vector<8x16xf32>
    %496 = arith.mulf %495, %480 : vector<8x16xf32>
    %497 = vector.broadcast %486 : f32 to vector<8x16xf32>
    %498 = arith.mulf %497, %485 : vector<8x16xf32>
    %499 = arith.addf %496, %498 : vector<8x16xf32>
    %c1_66 = arith.constant 1 : index
    %c2_67 = arith.constant 2 : index
    %500 = memref.load %arg2[%c1_66, %c2_67] : memref<2x4xf32, #tpu.memory_space<smem>>
    %c1_68 = arith.constant 1 : index
    %c2_69 = arith.constant 2 : index
    %501 = memref.load %arg3[%c1_68, %c2_69] : memref<2x4xf32, #tpu.memory_space<smem>>
    %502 = vector.broadcast %501 : f32 to vector<1x16xf32>
    %503 = arith.mulf %502, %30 : vector<1x16xf32>
    %504 = vector.broadcast %500 : f32 to vector<8x16xf32>
    %505 = arith.mulf %504, %494 : vector<8x16xf32>
    %506 = vector.broadcast %503 : vector<1x16xf32> to vector<8x16xf32>
    %507 = arith.mulf %506, %499 : vector<8x16xf32>
    %508 = arith.subf %505, %507 : vector<8x16xf32>
    %509 = vector.broadcast %503 : vector<1x16xf32> to vector<8x16xf32>
    %510 = arith.mulf %509, %494 : vector<8x16xf32>
    %511 = vector.broadcast %500 : f32 to vector<8x16xf32>
    %512 = arith.mulf %511, %499 : vector<8x16xf32>
    %513 = arith.addf %510, %512 : vector<8x16xf32>
    %c1_70 = arith.constant 1 : index
    %c3_71 = arith.constant 3 : index
    %514 = memref.load %arg2[%c1_70, %c3_71] : memref<2x4xf32, #tpu.memory_space<smem>>
    %c1_72 = arith.constant 1 : index
    %c3_73 = arith.constant 3 : index
    %515 = memref.load %arg3[%c1_72, %c3_73] : memref<2x4xf32, #tpu.memory_space<smem>>
    %516 = vector.broadcast %515 : f32 to vector<1x16xf32>
    %517 = arith.mulf %516, %34 : vector<1x16xf32>
    %518 = vector.broadcast %514 : f32 to vector<8x16xf32>
    %519 = arith.mulf %518, %508 : vector<8x16xf32>
    %520 = vector.broadcast %517 : vector<1x16xf32> to vector<8x16xf32>
    %521 = arith.mulf %520, %513 : vector<8x16xf32>
    %522 = arith.subf %519, %521 : vector<8x16xf32>
    %523 = vector.broadcast %517 : vector<1x16xf32> to vector<8x16xf32>
    %524 = arith.mulf %523, %508 : vector<8x16xf32>
    %525 = vector.broadcast %514 : f32 to vector<8x16xf32>
    %526 = arith.mulf %525, %513 : vector<8x16xf32>
    %527 = arith.addf %524, %526 : vector<8x16xf32>
    %c1_74 = arith.constant 1 : index
    %c0_75 = arith.constant 0 : index
    %528 = memref.load %arg4[%c1_74, %c0_75] : memref<2x4xf32, #tpu.memory_space<smem>>
    %c1_76 = arith.constant 1 : index
    %c0_77 = arith.constant 0 : index
    %529 = memref.load %arg5[%c1_76, %c0_77] : memref<2x4xf32, #tpu.memory_space<smem>>
    %530 = vector.broadcast %529 : f32 to vector<1x16xf32>
    %531 = arith.mulf %530, %22 : vector<1x16xf32>
    %532 = vector.extract_strided_slice %522 {offsets = [0, 8], sizes = [8, 8], strides = [1, 1]} : vector<8x16xf32> to vector<8x8xf32>
    %533 = vector.extract_strided_slice %522 {offsets = [0, 0], sizes = [8, 8], strides = [1, 1]} : vector<8x16xf32> to vector<8x8xf32>
    %534 = tpu.concatenate %532, %533 in 1 : vector<8x8xf32>, vector<8x8xf32> -> vector<8x16xf32>
    %535 = vector.extract_strided_slice %522 {offsets = [0, 8], sizes = [8, 8], strides = [1, 1]} : vector<8x16xf32> to vector<8x8xf32>
    %536 = vector.extract_strided_slice %522 {offsets = [0, 0], sizes = [8, 8], strides = [1, 1]} : vector<8x16xf32> to vector<8x8xf32>
    %537 = tpu.concatenate %535, %536 in 1 : vector<8x8xf32>, vector<8x8xf32> -> vector<8x16xf32>
    %538 = vector.shape_cast %12 : vector<1x16xi1> to vector<1x16xi1>
    %539 = vector.broadcast %538 : vector<1x16xi1> to vector<8x16xi1>
    %540 = arith.select %539, %534, %537 : vector<8x16xi1>, vector<8x16xf32>
    %541 = vector.extract_strided_slice %527 {offsets = [0, 8], sizes = [8, 8], strides = [1, 1]} : vector<8x16xf32> to vector<8x8xf32>
    %542 = vector.extract_strided_slice %527 {offsets = [0, 0], sizes = [8, 8], strides = [1, 1]} : vector<8x16xf32> to vector<8x8xf32>
    %543 = tpu.concatenate %541, %542 in 1 : vector<8x8xf32>, vector<8x8xf32> -> vector<8x16xf32>
    %544 = vector.extract_strided_slice %527 {offsets = [0, 8], sizes = [8, 8], strides = [1, 1]} : vector<8x16xf32> to vector<8x8xf32>
    %545 = vector.extract_strided_slice %527 {offsets = [0, 0], sizes = [8, 8], strides = [1, 1]} : vector<8x16xf32> to vector<8x8xf32>
    %546 = tpu.concatenate %544, %545 in 1 : vector<8x8xf32>, vector<8x8xf32> -> vector<8x16xf32>
    %547 = vector.shape_cast %12 : vector<1x16xi1> to vector<1x16xi1>
    %548 = vector.broadcast %547 : vector<1x16xi1> to vector<8x16xi1>
    %549 = arith.select %548, %543, %546 : vector<8x16xi1>, vector<8x16xf32>
    %550 = vector.broadcast %528 : f32 to vector<8x16xf32>
    %551 = arith.mulf %550, %522 : vector<8x16xf32>
    %552 = vector.broadcast %531 : vector<1x16xf32> to vector<8x16xf32>
    %553 = arith.mulf %552, %540 : vector<8x16xf32>
    %554 = arith.addf %551, %553 : vector<8x16xf32>
    %555 = vector.broadcast %528 : f32 to vector<8x16xf32>
    %556 = arith.mulf %555, %527 : vector<8x16xf32>
    %557 = vector.broadcast %531 : vector<1x16xf32> to vector<8x16xf32>
    %558 = arith.mulf %557, %549 : vector<8x16xf32>
    %559 = arith.addf %556, %558 : vector<8x16xf32>
    %c1_78 = arith.constant 1 : index
    %c1_79 = arith.constant 1 : index
    %560 = memref.load %arg4[%c1_78, %c1_79] : memref<2x4xf32, #tpu.memory_space<smem>>
    %c1_80 = arith.constant 1 : index
    %c1_81 = arith.constant 1 : index
    %561 = memref.load %arg5[%c1_80, %c1_81] : memref<2x4xf32, #tpu.memory_space<smem>>
    %562 = vector.broadcast %561 : f32 to vector<1x16xf32>
    %563 = arith.mulf %562, %26 : vector<1x16xf32>
    %564 = vector.extract_strided_slice %554 {offsets = [0, 4], sizes = [8, 12], strides = [1, 1]} : vector<8x16xf32> to vector<8x12xf32>
    %565 = vector.extract_strided_slice %554 {offsets = [0, 0], sizes = [8, 4], strides = [1, 1]} : vector<8x16xf32> to vector<8x4xf32>
    %566 = tpu.concatenate %564, %565 in 1 : vector<8x12xf32>, vector<8x4xf32> -> vector<8x16xf32>
    %567 = vector.extract_strided_slice %554 {offsets = [0, 12], sizes = [8, 4], strides = [1, 1]} : vector<8x16xf32> to vector<8x4xf32>
    %568 = vector.extract_strided_slice %554 {offsets = [0, 0], sizes = [8, 12], strides = [1, 1]} : vector<8x16xf32> to vector<8x12xf32>
    %569 = tpu.concatenate %567, %568 in 1 : vector<8x4xf32>, vector<8x12xf32> -> vector<8x16xf32>
    %570 = vector.shape_cast %14 : vector<1x16xi1> to vector<1x16xi1>
    %571 = vector.broadcast %570 : vector<1x16xi1> to vector<8x16xi1>
    %572 = arith.select %571, %566, %569 : vector<8x16xi1>, vector<8x16xf32>
    %573 = vector.extract_strided_slice %559 {offsets = [0, 4], sizes = [8, 12], strides = [1, 1]} : vector<8x16xf32> to vector<8x12xf32>
    %574 = vector.extract_strided_slice %559 {offsets = [0, 0], sizes = [8, 4], strides = [1, 1]} : vector<8x16xf32> to vector<8x4xf32>
    %575 = tpu.concatenate %573, %574 in 1 : vector<8x12xf32>, vector<8x4xf32> -> vector<8x16xf32>
    %576 = vector.extract_strided_slice %559 {offsets = [0, 12], sizes = [8, 4], strides = [1, 1]} : vector<8x16xf32> to vector<8x4xf32>
    %577 = vector.extract_strided_slice %559 {offsets = [0, 0], sizes = [8, 12], strides = [1, 1]} : vector<8x16xf32> to vector<8x12xf32>
    %578 = tpu.concatenate %576, %577 in 1 : vector<8x4xf32>, vector<8x12xf32> -> vector<8x16xf32>
    %579 = vector.shape_cast %14 : vector<1x16xi1> to vector<1x16xi1>
    %580 = vector.broadcast %579 : vector<1x16xi1> to vector<8x16xi1>
    %581 = arith.select %580, %575, %578 : vector<8x16xi1>, vector<8x16xf32>
    %582 = vector.broadcast %560 : f32 to vector<8x16xf32>
    %583 = arith.mulf %582, %554 : vector<8x16xf32>
    %584 = vector.broadcast %563 : vector<1x16xf32> to vector<8x16xf32>
    %585 = arith.mulf %584, %572 : vector<8x16xf32>
    %586 = arith.addf %583, %585 : vector<8x16xf32>
    %587 = vector.broadcast %560 : f32 to vector<8x16xf32>
    %588 = arith.mulf %587, %559 : vector<8x16xf32>
    %589 = vector.broadcast %563 : vector<1x16xf32> to vector<8x16xf32>
    %590 = arith.mulf %589, %581 : vector<8x16xf32>
    %591 = arith.addf %588, %590 : vector<8x16xf32>
    %c1_82 = arith.constant 1 : index
    %c2_83 = arith.constant 2 : index
    %592 = memref.load %arg4[%c1_82, %c2_83] : memref<2x4xf32, #tpu.memory_space<smem>>
    %c1_84 = arith.constant 1 : index
    %c2_85 = arith.constant 2 : index
    %593 = memref.load %arg5[%c1_84, %c2_85] : memref<2x4xf32, #tpu.memory_space<smem>>
    %594 = vector.broadcast %593 : f32 to vector<1x16xf32>
    %595 = arith.mulf %594, %30 : vector<1x16xf32>
    %596 = vector.extract_strided_slice %586 {offsets = [0, 2], sizes = [8, 14], strides = [1, 1]} : vector<8x16xf32> to vector<8x14xf32>
    %597 = vector.extract_strided_slice %586 {offsets = [0, 0], sizes = [8, 2], strides = [1, 1]} : vector<8x16xf32> to vector<8x2xf32>
    %598 = tpu.concatenate %596, %597 in 1 : vector<8x14xf32>, vector<8x2xf32> -> vector<8x16xf32>
    %599 = vector.extract_strided_slice %586 {offsets = [0, 14], sizes = [8, 2], strides = [1, 1]} : vector<8x16xf32> to vector<8x2xf32>
    %600 = vector.extract_strided_slice %586 {offsets = [0, 0], sizes = [8, 14], strides = [1, 1]} : vector<8x16xf32> to vector<8x14xf32>
    %601 = tpu.concatenate %599, %600 in 1 : vector<8x2xf32>, vector<8x14xf32> -> vector<8x16xf32>
    %602 = vector.shape_cast %16 : vector<1x16xi1> to vector<1x16xi1>
    %603 = vector.broadcast %602 : vector<1x16xi1> to vector<8x16xi1>
    %604 = arith.select %603, %598, %601 : vector<8x16xi1>, vector<8x16xf32>
    %605 = vector.extract_strided_slice %591 {offsets = [0, 2], sizes = [8, 14], strides = [1, 1]} : vector<8x16xf32> to vector<8x14xf32>
    %606 = vector.extract_strided_slice %591 {offsets = [0, 0], sizes = [8, 2], strides = [1, 1]} : vector<8x16xf32> to vector<8x2xf32>
    %607 = tpu.concatenate %605, %606 in 1 : vector<8x14xf32>, vector<8x2xf32> -> vector<8x16xf32>
    %608 = vector.extract_strided_slice %591 {offsets = [0, 14], sizes = [8, 2], strides = [1, 1]} : vector<8x16xf32> to vector<8x2xf32>
    %609 = vector.extract_strided_slice %591 {offsets = [0, 0], sizes = [8, 14], strides = [1, 1]} : vector<8x16xf32> to vector<8x14xf32>
    %610 = tpu.concatenate %608, %609 in 1 : vector<8x2xf32>, vector<8x14xf32> -> vector<8x16xf32>
    %611 = vector.shape_cast %16 : vector<1x16xi1> to vector<1x16xi1>
    %612 = vector.broadcast %611 : vector<1x16xi1> to vector<8x16xi1>
    %613 = arith.select %612, %607, %610 : vector<8x16xi1>, vector<8x16xf32>
    %614 = vector.broadcast %592 : f32 to vector<8x16xf32>
    %615 = arith.mulf %614, %586 : vector<8x16xf32>
    %616 = vector.broadcast %595 : vector<1x16xf32> to vector<8x16xf32>
    %617 = arith.mulf %616, %604 : vector<8x16xf32>
    %618 = arith.addf %615, %617 : vector<8x16xf32>
    %619 = vector.broadcast %592 : f32 to vector<8x16xf32>
    %620 = arith.mulf %619, %591 : vector<8x16xf32>
    %621 = vector.broadcast %595 : vector<1x16xf32> to vector<8x16xf32>
    %622 = arith.mulf %621, %613 : vector<8x16xf32>
    %623 = arith.addf %620, %622 : vector<8x16xf32>
    %c1_86 = arith.constant 1 : index
    %c3_87 = arith.constant 3 : index
    %624 = memref.load %arg4[%c1_86, %c3_87] : memref<2x4xf32, #tpu.memory_space<smem>>
    %c1_88 = arith.constant 1 : index
    %c3_89 = arith.constant 3 : index
    %625 = memref.load %arg5[%c1_88, %c3_89] : memref<2x4xf32, #tpu.memory_space<smem>>
    %626 = vector.broadcast %625 : f32 to vector<1x16xf32>
    %627 = arith.mulf %626, %34 : vector<1x16xf32>
    %628 = vector.extract_strided_slice %618 {offsets = [0, 1], sizes = [8, 15], strides = [1, 1]} : vector<8x16xf32> to vector<8x15xf32>
    %629 = vector.extract_strided_slice %618 {offsets = [0, 0], sizes = [8, 1], strides = [1, 1]} : vector<8x16xf32> to vector<8x1xf32>
    %630 = tpu.concatenate %628, %629 in 1 : vector<8x15xf32>, vector<8x1xf32> -> vector<8x16xf32>
    %631 = vector.extract_strided_slice %618 {offsets = [0, 15], sizes = [8, 1], strides = [1, 1]} : vector<8x16xf32> to vector<8x1xf32>
    %632 = vector.extract_strided_slice %618 {offsets = [0, 0], sizes = [8, 15], strides = [1, 1]} : vector<8x16xf32> to vector<8x15xf32>
    %633 = tpu.concatenate %631, %632 in 1 : vector<8x1xf32>, vector<8x15xf32> -> vector<8x16xf32>
    %634 = vector.shape_cast %18 : vector<1x16xi1> to vector<1x16xi1>
    %635 = vector.broadcast %634 : vector<1x16xi1> to vector<8x16xi1>
    %636 = arith.select %635, %630, %633 : vector<8x16xi1>, vector<8x16xf32>
    %637 = vector.extract_strided_slice %623 {offsets = [0, 1], sizes = [8, 15], strides = [1, 1]} : vector<8x16xf32> to vector<8x15xf32>
    %638 = vector.extract_strided_slice %623 {offsets = [0, 0], sizes = [8, 1], strides = [1, 1]} : vector<8x16xf32> to vector<8x1xf32>
    %639 = tpu.concatenate %637, %638 in 1 : vector<8x15xf32>, vector<8x1xf32> -> vector<8x16xf32>
    %640 = vector.extract_strided_slice %623 {offsets = [0, 15], sizes = [8, 1], strides = [1, 1]} : vector<8x16xf32> to vector<8x1xf32>
    %641 = vector.extract_strided_slice %623 {offsets = [0, 0], sizes = [8, 15], strides = [1, 1]} : vector<8x16xf32> to vector<8x15xf32>
    %642 = tpu.concatenate %640, %641 in 1 : vector<8x1xf32>, vector<8x15xf32> -> vector<8x16xf32>
    %643 = vector.shape_cast %18 : vector<1x16xi1> to vector<1x16xi1>
    %644 = vector.broadcast %643 : vector<1x16xi1> to vector<8x16xi1>
    %645 = arith.select %644, %639, %642 : vector<8x16xi1>, vector<8x16xf32>
    %646 = vector.broadcast %624 : f32 to vector<8x16xf32>
    %647 = arith.mulf %646, %618 : vector<8x16xf32>
    %648 = vector.broadcast %627 : vector<1x16xf32> to vector<8x16xf32>
    %649 = arith.mulf %648, %636 : vector<8x16xf32>
    %650 = arith.addf %647, %649 : vector<8x16xf32>
    %651 = vector.broadcast %624 : f32 to vector<8x16xf32>
    %652 = arith.mulf %651, %623 : vector<8x16xf32>
    %653 = vector.broadcast %627 : vector<1x16xf32> to vector<8x16xf32>
    %654 = arith.mulf %653, %645 : vector<8x16xf32>
    %655 = arith.addf %652, %654 : vector<8x16xf32>
    %656 = arith.mulf %650, %650 : vector<8x16xf32>
    %657 = arith.mulf %655, %655 : vector<8x16xf32>
    %658 = arith.addf %656, %657 : vector<8x16xf32>
    %c0_90 = arith.constant 0 : index
    %c0_91 = arith.constant 0 : index
    %659 = vector.load %arg9[%c0_90, %c0_91] : memref<4x16xf32, #tpu.memory_space<vmem>>, vector<1x16xf32>
    %660 = vector.broadcast %659 : vector<1x16xf32> to vector<8x16xf32>
    %661 = arith.mulf %658, %660 : vector<8x16xf32>
    %cst_92 = arith.constant dense<0.000000e+00> : vector<8xf32>
    %662 = vector.multi_reduction <add>, %661, %cst_92 [1] : vector<8x16xf32> to vector<8xf32>
    %663 = vector.shape_cast %662 : vector<8xf32> to vector<8x1xf32>
    %c1_93 = arith.constant 1 : index
    %c0_94 = arith.constant 0 : index
    %664 = vector.load %arg9[%c1_93, %c0_94] : memref<4x16xf32, #tpu.memory_space<vmem>>, vector<1x16xf32>
    %665 = vector.broadcast %664 : vector<1x16xf32> to vector<8x16xf32>
    %666 = arith.mulf %658, %665 : vector<8x16xf32>
    %cst_95 = arith.constant dense<0.000000e+00> : vector<8xf32>
    %667 = vector.multi_reduction <add>, %666, %cst_95 [1] : vector<8x16xf32> to vector<8xf32>
    %668 = vector.shape_cast %667 : vector<8xf32> to vector<8x1xf32>
    %c2_96 = arith.constant 2 : index
    %c0_97 = arith.constant 0 : index
    %669 = vector.load %arg9[%c2_96, %c0_97] : memref<4x16xf32, #tpu.memory_space<vmem>>, vector<1x16xf32>
    %670 = vector.broadcast %669 : vector<1x16xf32> to vector<8x16xf32>
    %671 = arith.mulf %658, %670 : vector<8x16xf32>
    %cst_98 = arith.constant dense<0.000000e+00> : vector<8xf32>
    %672 = vector.multi_reduction <add>, %671, %cst_98 [1] : vector<8x16xf32> to vector<8xf32>
    %673 = vector.shape_cast %672 : vector<8xf32> to vector<8x1xf32>
    %c3_99 = arith.constant 3 : index
    %c0_100 = arith.constant 0 : index
    %674 = vector.load %arg9[%c3_99, %c0_100] : memref<4x16xf32, #tpu.memory_space<vmem>>, vector<1x16xf32>
    %675 = vector.broadcast %674 : vector<1x16xf32> to vector<8x16xf32>
    %676 = arith.mulf %658, %675 : vector<8x16xf32>
    %cst_101 = arith.constant dense<0.000000e+00> : vector<8xf32>
    %677 = vector.multi_reduction <add>, %676, %cst_101 [1] : vector<8x16xf32> to vector<8xf32>
    %678 = vector.shape_cast %677 : vector<8xf32> to vector<8x1xf32>
    %679 = tpu.concatenate %663, %668, %673, %678 in 1 : vector<8x1xf32>, vector<8x1xf32>, vector<8x1xf32>, vector<8x1xf32> -> vector<8x4xf32>
    %c0_102 = arith.constant 0 : index
    %c0_103 = arith.constant 0 : index
    %680 = vector.load %arg6[%c0_102, %c0_103] : memref<1x4xf32, #tpu.memory_space<vmem>>, vector<1x4xf32>
    %681 = vector.broadcast %680 : vector<1x4xf32> to vector<8x4xf32>
    %682 = arith.mulf %679, %681 : vector<8x4xf32>
    %cst_104 = arith.constant dense<0xFF800000> : vector<8xf32>
    %683 = vector.multi_reduction <maximumf>, %682, %cst_104 [1] : vector<8x4xf32> to vector<8xf32>
    %684 = vector.shape_cast %683 : vector<8xf32> to vector<8x1xf32>
    %685 = vector.broadcast %684 : vector<8x1xf32> to vector<8x4xf32>
    %686 = arith.subf %682, %685 : vector<8x4xf32>
    %687 = math.exp %686 : vector<8x4xf32>
    %cst_105 = arith.constant dense<0.000000e+00> : vector<8xf32>
    %688 = vector.multi_reduction <add>, %687, %cst_105 [1] : vector<8x4xf32> to vector<8xf32>
    %689 = vector.shape_cast %688 : vector<8xf32> to vector<8x1xf32>
    %690 = math.log %689 : vector<8x1xf32>
    %691 = arith.addf %684, %690 : vector<8x1xf32>
    %692 = vector.broadcast %691 : vector<8x1xf32> to vector<8x4xf32>
    %693 = arith.subf %682, %692 : vector<8x4xf32>
    %c0_106 = arith.constant 0 : index
    %c0_107 = arith.constant 0 : index
    %694 = vector.load %arg10[%c0_106, %c0_107] : memref<8x4xf32, #tpu.memory_space<vmem>>, vector<8x4xf32>
    %695 = arith.addf %693, %694 : vector<8x4xf32>
    %cst_108 = arith.constant dense<0xFF800000> : vector<8xf32>
    %696 = vector.multi_reduction <maximumf>, %695, %cst_108 [1] : vector<8x4xf32> to vector<8xf32>
    %697 = vector.shape_cast %696 : vector<8xf32> to vector<8x1xf32>
    %698 = tpu.iota {dimensions = array<i32: 1>} : vector<8x4xi32>
    %699 = vector.broadcast %697 : vector<8x1xf32> to vector<8x4xf32>
    %700 = arith.cmpf oge, %695, %699 : vector<8x4xf32>
    %c4_i32 = arith.constant 4 : i32
    %701 = vector.broadcast %c4_i32 : i32 to vector<8x4xi32>
    %702 = arith.select %700, %698, %701 : vector<8x4xi1>, vector<8x4xi32>
    %cst_109 = arith.constant dense<2147483647> : vector<8xi32>
    %703 = vector.multi_reduction <minsi>, %702, %cst_109 [1] : vector<8x4xi32> to vector<8xi32>
    %704 = vector.shape_cast %703 : vector<8xi32> to vector<8x1xi32>
    %705 = vector.broadcast %704 : vector<8x1xi32> to vector<8x4xi32>
    %706 = arith.cmpi eq, %698, %705 : vector<8x4xi32>
    %cst_110 = arith.constant 0.000000e+00 : f32
    %707 = vector.broadcast %cst_110 : f32 to vector<8x4xf32>
    %708 = arith.select %706, %693, %707 : vector<8x4xi1>, vector<8x4xf32>
    %cst_111 = arith.constant dense<0.000000e+00> : vector<8xf32>
    %709 = vector.multi_reduction <add>, %708, %cst_111 [1] : vector<8x4xf32> to vector<8xf32>
    %710 = vector.shape_cast %709 : vector<8xf32> to vector<8x1xf32>
    %711 = tpu.iota {dimensions = array<i32: 1>} : vector<8x128xi32>
    %c0_i32_112 = arith.constant 0 : i32
    %712 = vector.broadcast %c0_i32_112 : i32 to vector<8x128xi32>
    %713 = arith.cmpi eq, %711, %712 : vector<8x128xi32>
    %714 = arith.sitofp %704 : vector<8x1xi32> to vector<8x1xf32>
    %c1_i32 = arith.constant 1 : i32
    %715 = vector.broadcast %c1_i32 : i32 to vector<8x128xi32>
    %716 = arith.cmpi eq, %711, %715 : vector<8x128xi32>
    %cst_113 = arith.constant 0.000000e+00 : f32
    %717 = vector.shape_cast %710 : vector<8x1xf32> to vector<8x1xf32>
    %718 = vector.broadcast %717 : vector<8x1xf32> to vector<8x128xf32>
    %719 = vector.broadcast %cst_113 : f32 to vector<8x128xf32>
    %720 = arith.select %716, %718, %719 : vector<8x128xi1>, vector<8x128xf32>
    %721 = vector.shape_cast %714 : vector<8x1xf32> to vector<8x1xf32>
    %722 = vector.broadcast %721 : vector<8x1xf32> to vector<8x128xf32>
    %723 = arith.select %713, %722, %720 : vector<8x128xi1>, vector<8x128xf32>
    %c0_114 = arith.constant 0 : index
    %c0_115 = arith.constant 0 : index
    %724 = vector.load %arg11[%c0_114, %c0_115] : memref<8x128xf32, #tpu.memory_space<vmem>>, vector<8x128xf32>
    tpu.vector_store %arg11[%c0_114, %c0_115], %723 {strides = array<i32>} : memref<8x128xf32, #tpu.memory_space<vmem>>, vector<8x128xf32>,
    return
  }
  func.func @transform_0(%arg0: i32) -> (i32, i32, i32) {
    %c0_i32 = arith.constant 0 : i32
    %c0_i32_0 = arith.constant 0 : i32
    %c0_i32_1 = arith.constant 0 : i32
    return %c0_i32, %arg0, %c0_i32_0 : i32, i32, i32
  }
  func.func @transform_1(%arg0: i32) -> (i32, i32) {
    %c0_i32 = arith.constant 0 : i32
    %c0_i32_0 = arith.constant 0 : i32
    %c0_i32_1 = arith.constant 0 : i32
    return %c0_i32, %c0_i32_0 : i32, i32
  }
  func.func @transform_2(%arg0: i32) -> (i32, i32) {
    %c0_i32 = arith.constant 0 : i32
    %c0_i32_0 = arith.constant 0 : i32
    %c0_i32_1 = arith.constant 0 : i32
    return %c0_i32, %c0_i32_0 : i32, i32
  }
  func.func @transform_3(%arg0: i32) -> (i32, i32) {
    %c0_i32 = arith.constant 0 : i32
    %c0_i32_0 = arith.constant 0 : i32
    %c0_i32_1 = arith.constant 0 : i32
    return %c0_i32, %c0_i32_0 : i32, i32
  }
  func.func @transform_4(%arg0: i32) -> (i32, i32) {
    %c0_i32 = arith.constant 0 : i32
    %c0_i32_0 = arith.constant 0 : i32
    %c0_i32_1 = arith.constant 0 : i32
    return %c0_i32, %c0_i32_0 : i32, i32
  }
  func.func @transform_5(%arg0: i32) -> (i32, i32) {
    %c0_i32 = arith.constant 0 : i32
    %c0_i32_0 = arith.constant 0 : i32
    %c0_i32_1 = arith.constant 0 : i32
    return %c0_i32, %c0_i32_0 : i32, i32
  }
  func.func @transform_6(%arg0: i32) -> (i32, i32) {
    %c0_i32 = arith.constant 0 : i32
    %c0_i32_0 = arith.constant 0 : i32
    %c0_i32_1 = arith.constant 0 : i32
    return %c0_i32, %c0_i32_0 : i32, i32
  }
  func.func @transform_7(%arg0: i32) -> (i32, i32) {
    %c0_i32 = arith.constant 0 : i32
    %c0_i32_0 = arith.constant 0 : i32
    %c0_i32_1 = arith.constant 0 : i32
    return %c0_i32, %c0_i32_0 : i32, i32
  }
  func.func @transform_8(%arg0: i32) -> (i32, i32) {
    %c0_i32 = arith.constant 0 : i32
    %c0_i32_0 = arith.constant 0 : i32
    %c0_i32_1 = arith.constant 0 : i32
    return %c0_i32, %c0_i32_0 : i32, i32
  }
  func.func @transform_9(%arg0: i32) -> (i32, i32) {
    %c0_i32 = arith.constant 0 : i32
    %c0_i32_0 = arith.constant 0 : i32
    return %arg0, %c0_i32 : i32, i32
  }
  func.func @transform_10(%arg0: i32) -> (i32, i32) {
    %c0_i32 = arith.constant 0 : i32
    %c0_i32_0 = arith.constant 0 : i32
    return %arg0, %c0_i32 : i32, i32
  }
}

</mosaic_0001>

<llo_original>
// kernel: tpu_custom_call.1
$region0: #{tpu_custom_call.1}
  #allocation0 [shape = 'u32[]', space=smem, size = 0x4, offset = 0x4, fixed_abs, tag = 'smem constant byte address 0x4 - core index']
  #allocation1 [shape = 'u32[144,128]{1,0:T(1,128)}', space=vmem, size = 0x12000, scoped, tag = 'internal scratch']
  %s0 = inlined_call_operand.vmem [shape: f32[2,8,4], index: 0, kind: input, shape index: {}]
  %s1 = inlined_call_operand.vmem [shape: f32[2,4], index: 1, kind: input, shape index: {}]
  %s2 = inlined_call_operand.vmem [shape: f32[2,4], index: 2, kind: input, shape index: {}]
  %s3 = inlined_call_operand.vmem [shape: f32[2,4], index: 3, kind: input, shape index: {}]
  %s4 = inlined_call_operand.vmem [shape: f32[2,4], index: 4, kind: input, shape index: {}]
  %s5 = inlined_call_operand.vmem [shape: f32[1,4], index: 5, kind: input, shape index: {}]
  %s6 = inlined_call_operand.vmem [shape: f32[4,16], index: 6, kind: input, shape index: {}]
  %s7 = inlined_call_operand.vmem [shape: f32[1,16], index: 7, kind: input, shape index: {}]
  %s8 = inlined_call_operand.vmem [shape: f32[4,16], index: 8, kind: input, shape index: {}]
  %s9 = inlined_call_operand.vmem [shape: f32[8,4], index: 9, kind: input, shape index: {}]
  %s10 = inlined_call_operand.hbm [shape: f32[8,128], index: 10, kind: output, shape index: {}]
  %s11 = sld [smem:[#allocation0]]
  $region66: #{tpu_custom_call.1} parent=0
    _
  %s13 = ssub.s32 1, %s11
  %s14 = scalar_select 0, %s13, %s11
  $region1: #{tpu_custom_call.1} parent=0
    #allocation2 [shape = 'u8[1024]{0}', space=smem, size = 0x400, scoped, tag = 'input window, operand 1, single buffered']
    #allocation3 [shape = 's32[1]{0}', space=sflag, size = 0x4, scoped, tag = 'scoped memory for tpu_custom_call.1']
    #allocation4 [shape = 's32[1]{0}', space=sflag, size = 0x4, scoped, tag = 'scoped memory for tpu_custom_call.1']
    #allocation5 [shape = 'u8[1024]{0}', space=smem, size = 0x400, scoped, tag = 'input window, operand 2, single buffered']
    #allocation6 [shape = 's32[1]{0}', space=sflag, size = 0x4, scoped, tag = 'scoped memory for tpu_custom_call.1']
    #allocation7 [shape = 'u8[1024]{0}', space=smem, size = 0x400, scoped, tag = 'input window, operand 3, single buffered']
    #allocation8 [shape = 'u8[1024]{0}', space=smem, size = 0x400, scoped, tag = 'input window, operand 4, single buffered']
    #allocation9 [shape = 's32[1]{0}', space=sflag, size = 0x4, scoped, tag = 'scoped memory for tpu_custom_call.1']
    #allocation10 [shape = 'u8[4096]{0}', space=vmem, size = 0x1000, scoped, tag = 'output window, operand 0, single buffered']
    %15 = vsyncpa [#allocation4], 0
    %16 = vsyncpa [#allocation6], 0
    %17 = vsyncpa [#allocation9], 0
    %18 = vsyncpa [#allocation3], 0
    // Predicated region
    $region2: #{tpu_custom_call.1} parent=1 // pred_check
      _
    $region3: #{tpu_custom_call.1} parent=1 // pred_check_branch
      %20 = sbr.rel (0) target = $region5
    $region4: #{tpu_custom_call.1} parent=1 // pred_region
      _
    $region5: #{tpu_custom_call.1} parent=1 // pred_fallthru
      _
    // Predicated region
    $region6: #{tpu_custom_call.1} parent=1 // pred_check
      _
    $region7: #{tpu_custom_call.1} parent=1 // pred_check_branch
      %22 = sbr.rel (0) target = $region9
    $region8: #{tpu_custom_call.1} parent=1 // pred_region
      %s24 = ssub.s32 32, 32
      %25 = vsyncadd [#allocation4], %s24
      %s27 = sshll.u32 %s1, 4
      %s28 = int_to_ptr.vmem [resolvable:$true] %s27
      %30 = dma.vmem_to_smem %s28, 32, [#allocation2], [#allocation4]
    $region9: #{tpu_custom_call.1} parent=1 // pred_fallthru
      _
    // Predicated region
    $region10: #{tpu_custom_call.1} parent=1 // pred_check
      _
    $region11: #{tpu_custom_call.1} parent=1 // pred_check_branch
      %32 = sbr.rel (0) target = $region13
    $region12: #{tpu_custom_call.1} parent=1 // pred_region
      %s34 = ssub.s32 32, 32
      %35 = vsyncadd [#allocation6], %s34
      %s37 = sshll.u32 %s2, 4
      %s38 = int_to_ptr.vmem [resolvable:$true] %s37
      %40 = dma.vmem_to_smem %s38, 32, [#allocation5], [#allocation6]
    $region13: #{tpu_custom_call.1} parent=1 // pred_fallthru
      _
    // Predicated region
    $region14: #{tpu_custom_call.1} parent=1 // pred_check
      _
    $region15: #{tpu_custom_call.1} parent=1 // pred_check_branch
      %42 = sbr.rel (0) target = $region17
    $region16: #{tpu_custom_call.1} parent=1 // pred_region
      %s44 = ssub.s32 32, 32
      %45 = vsyncadd [#allocation6], %s44
      %s47 = sshll.u32 %s3, 4
      %s48 = int_to_ptr.vmem [resolvable:$true] %s47
      %50 = dma.vmem_to_smem %s48, 32, [#allocation7], [#allocation6]
    $region17: #{tpu_custom_call.1} parent=1 // pred_fallthru
      _
    // Predicated region
    $region18: #{tpu_custom_call.1} parent=1 // pred_check
      _
    $region19: #{tpu_custom_call.1} parent=1 // pred_check_branch
      %52 = sbr.rel (0) target = $region21
    $region20: #{tpu_custom_call.1} parent=1 // pred_region
      %s54 = ssub.s32 32, 32
      %55 = vsyncadd [#allocation9], %s54
      %s57 = sshll.u32 %s4, 4
      %s58 = int_to_ptr.vmem [resolvable:$true] %s57
      %60 = dma.vmem_to_smem %s58, 32, [#allocation8], [#allocation9]
    $region21: #{tpu_custom_call.1} parent=1 // pred_fallthru
      _
    // Predicated region
    $region22: #{tpu_custom_call.1} parent=1 // pred_check
      _
    $region23: #{tpu_custom_call.1} parent=1 // pred_check_branch
      %62 = sbr.rel (0) target = $region25
    $region24: #{tpu_custom_call.1} parent=1 // pred_region
      _
    $region25: #{tpu_custom_call.1} parent=1 // pred_fallthru
      _
    // Predicated region
    $region26: #{tpu_custom_call.1} parent=1 // pred_check
      _
    $region27: #{tpu_custom_call.1} parent=1 // pred_check_branch
      %64 = sbr.rel (0) target = $region29
    $region28: #{tpu_custom_call.1} parent=1 // pred_region
      _
    $region29: #{tpu_custom_call.1} parent=1 // pred_fallthru
      _
    // Predicated region
    $region30: #{tpu_custom_call.1} parent=1 // pred_check
      _
    $region31: #{tpu_custom_call.1} parent=1 // pred_check_branch
      %66 = sbr.rel (0) target = $region33
    $region32: #{tpu_custom_call.1} parent=1 // pred_region
      _
    $region33: #{tpu_custom_call.1} parent=1 // pred_fallthru
      _
    // Predicated region
    $region34: #{tpu_custom_call.1} parent=1 // pred_check
      _
    $region35: #{tpu_custom_call.1} parent=1 // pred_check_branch
      %68 = sbr.rel (0) target = $region37
    $region36: #{tpu_custom_call.1} parent=1 // pred_region
      _
    $region37: #{tpu_custom_call.1} parent=1 // pred_fallthru
      _
    // Predicated region
    $region38: #{tpu_custom_call.1} parent=1 // pred_check
      _
    $region39: #{tpu_custom_call.1} parent=1 // pred_check_branch
      %70 = sbr.rel (0) target = $region41
    $region40: #{tpu_custom_call.1} parent=1 // pred_region
      _
    $region41: #{tpu_custom_call.1} parent=1 // pred_fallthru
      _
    // Predicated region
    $region42: #{tpu_custom_call.1} parent=1 // pred_check
      _
    $region43: #{tpu_custom_call.1} parent=1 // pred_check_branch
      %72 = sbr.rel (0) target = $region45
    $region44: #{tpu_custom_call.1} parent=1 // pred_region
      %73 = dma.done [#allocation4], 32
    $region45: #{tpu_custom_call.1} parent=1 // pred_fallthru
      _
    // Predicated region
    $region46: #{tpu_custom_call.1} parent=1 // pred_check
      _
    $region47: #{tpu_custom_call.1} parent=1 // pred_check_branch
      %75 = sbr.rel (0) target = $region49
    $region48: #{tpu_custom_call.1} parent=1 // pred_region
      %76 = dma.done [#allocation6], 32
    $region49: #{tpu_custom_call.1} parent=1 // pred_fallthru
      _
    // Predicated region
    $region50: #{tpu_custom_call.1} parent=1 // pred_check
      _
    $region51: #{tpu_custom_call.1} parent=1 // pred_check_branch
      %78 = sbr.rel (0) target = $region53
    $region52: #{tpu_custom_call.1} parent=1 // pred_region
      %79 = dma.done [#allocation6], 32
    $region53: #{tpu_custom_call.1} parent=1 // pred_fallthru
      _
    // Predicated region
    $region54: #{tpu_custom_call.1} parent=1 // pred_check
      _
    $region55: #{tpu_custom_call.1} parent=1 // pred_check_branch
      %81 = sbr.rel (0) target = $region57
    $region56: #{tpu_custom_call.1} parent=1 // pred_region
      %82 = dma.done [#allocation9], 32
    $region57: #{tpu_custom_call.1} parent=1 // pred_fallthru
      _
    %83 = sfence
    %v84 = vlaneseq
    %v85 = vand.u32 %v84, 127
    %vm86 = vcmp.eq.s32.totalorder %v85, 0
    %v87 = vsel %vm86, 1.0, 0.0
    %v88 = vld [vmem:[%s6] sm:$0x1]
    %v89 = vld [vmem:[%s6 + $0x1] sm:$0x1]
    %v90 = vld [vmem:[%s6 + $0x2] sm:$0x1]
    %v91 = vld [vmem:[%s6 + $0x3] sm:$0x1]
    %vm92 = vcmp.eq.f32.partialorder %v89, 0.0
    %vm93 = vcmp.eq.f32.partialorder %v90, 0.0
    %vm94 = vcmp.eq.f32.partialorder %v91, 0.0
    %v95 = vmul.f32 %v88, 2.0
    %v96 = vsub.f32 %v95, 1.0
    %v97 = vmul.f32 %v89, 2.0
    %v98 = vsub.f32 %v97, 1.0
    %v99 = vmul.f32 %v90, 2.0
    %v100 = vsub.f32 %v99, 1.0
    %v101 = vmul.f32 %v91, 2.0
    %v102 = vsub.f32 %v101, 1.0
    %v103 = vld [vmem:[%s0] sm:$0xff]
    %v104 = vand.u32 2147483647, %v103
    %vm105 = vcmp.le.f32.partialorder %v104, 0.7853982
    %vm106 = vcmp.lt.s32.totalorder %v103, 0
    %v107 = vand.u32 %v103, 2139095040
    %v108 = vshrl.u32 %v107, 23
    %v109 = vsub.s32 %v108, 127
    %v110 = vand.u32 2147483647, %v103
    %v111 = vand.u32 %v110, 8388607
    %v112 = vor.u32 %v111, 8388608
    %v113 = vsub.s32 0, %v112
    %v114 = vadd.s32 %v109, 1
    %vm115 = vcmp.gt.s32.totalorder %v114, 0
    %v116 = vsel %vm115, %v114, 0
    %v117 = vshrl.u32 %v116, 5
    %v118 = vand.u32 %v116, 31
    %v119 = vsub.s32 32, %v118
    %v120 = vshrl.u32 683565275, %v119
    %v121 = vshll.u32 683565275, %v118
    %v122 = vshrl.u32 2475754826, %v119
    %v123 = vor.u32 %v121, %v122
    %v124 = vshll.u32 2475754826, %v118
    %v125 = vshrl.u32 2131351028, %v119
    %v126 = vor.u32 %v124, %v125
    %v127 = vshll.u32 2131351028, %v118
    %v128 = vshrl.u32 2102212464, %v119
    %v129 = vor.u32 %v127, %v128
    %v130 = vshll.u32 2102212464, %v118
    %v131 = vshrl.u32 920167782, %v119
    %v132 = vor.u32 %v130, %v131
    %v133 = vshll.u32 920167782, %v118
    %v134 = vshrl.u32 1326507024, %v119
    %v135 = vor.u32 %v133, %v134
    %vm136 = vcmp.lt.s32.totalorder %v117, 1
    %vm137 = vcmp.lt.s32.totalorder %v117, 2
    %vm138 = vcmp.lt.s32.totalorder %v117, 3
    %vm139 = vcmp.lt.s32.totalorder %v117, 4
    %v140 = vsel %vm136, %v120, %v123
    %v141 = vsel %vm139, %v129, 2102212464
    %v142 = vsel %vm138, %v126, %v141
    %v143 = vsel %vm137, %v140, %v142
    %v144 = vsel %vm136, %v123, %v126
    %v145 = vsel %vm139, %v132, 920167782
    %v146 = vsel %vm138, %v129, %v145
    %v147 = vsel %vm137, %v144, %v146
    %v148 = vsel %vm136, %v126, %v129
    %v149 = vsel %vm139, %v135, 1326507024
    %v150 = vsel %vm138, %v132, %v149
    %v151 = vsel %vm137, %v148, %v150
    %v152 = vshll.u32 %v112, 8
    %v153 = vmul.u32.u64.compose %v152, %v151
    %v154 = vextract.low.u32 %v153
    %v155 = vextract.high.u32 %v153
    %v156 = vmul.u32.u64.compose %v152, %v147
    %v157 = vextract.low.u32 %v156
    %v158 = vextract.high.u32 %v156
    %v159 = vmul.u32 %v152, %v143
    %v160 = vadd.s32 %v155, %v157
    %vm161 = vc.u32 %v155, %v157
    %v162 = vadd.s32 %v158, 1
    %v163 = vsel %vm161, %v162, %v158
    %v164 = vadd.s32 %v159, %v163
    %v165 = vadd.s32 %v164, 536870912
    %v166 = vshrl.u32 %v165, 30
    %v167 = vshll.u32 %v166, 30
    %v168 = vsub.s32 %v164, %v167
    %vm169 = vcmp.lt.s32.totalorder %v168, 0
    %v170 = vsub.s32 0, %v168
    %v171 = vsel %vm169, %v170, %v168
    %v172 = vclz %v171
    %v173 = vsub.s32 %v172, 2
    %vm174 = vcmp.gt.s32.totalorder 0, %v173
    %v175 = vsel %vm174, 0, %v173
    %v176 = vsub.s32 32, %v175
    %v177 = vshll.u32 %v168, %v175
    %v178 = vshrl.u32 %v160, %v176
    %v179 = vor.u32 %v177, %v178
    %v180 = vsub.s32 4294967266, %v175
    %v181 = vadd.s32 %v180, 127
    %v182 = vshll.u32 %v181, 23
    %v183 = vor.u32 4788187, %v182
    %v184 = vand.u32 2147483647, %v183
    %v186 = vcvt.s32.f32 %v179
    %v187 = vmul.f32 %v186, %v184
    %v188 = vxor.u32 %v187, 2147483648
    %v189 = vsel %vm106, %v188, %v187
    %v190 = vsub.s32 4, %v166
    %v191 = vsel %vm106, %v190, %v166
    %v192 = vsel %vm105, %v103, %v189
    %v193 = vsel %vm105, 0, %v191
    %v194 = vcosq.f32.pop %v192
    %v195 = vsinq.f32.pop %v192
    %vm196 = vweird.f32 %v103
    %v197 = vand.u32 %v193, 3
    %vm198 = vcmp.lt.s32.totalorder %v197, 2
    %vm199 = vcmp.eq.s32.totalorder %v197, 0
    %v200 = vxor.u32 %v195, 2147483648
    %v201 = vsel %vm199, %v194, %v200
    %vm202 = vcmp.eq.s32.totalorder %v197, 2
    %v203 = vxor.u32 %v194, 2147483648
    %v204 = vsel %vm202, %v203, %v195
    %v205 = vsel %vm198, %v201, %v204
    %v206 = vsel %vm196, nan, %v205
    %v207 = vand.u32 2147483647, %v103
    %vm208 = vcmp.le.f32.partialorder %v207, 0.7853982
    %vm209 = vcmp.lt.s32.totalorder %v103, 0
    %v210 = vand.u32 %v103, 2139095040
    %v211 = vshrl.u32 %v210, 23
    %v212 = vsub.s32 %v211, 127
    %v213 = vand.u32 2147483647, %v103
    %v214 = vand.u32 %v213, 8388607
    %v215 = vor.u32 %v214, 8388608
    %v216 = vsub.s32 0, %v215
    %v217 = vadd.s32 %v212, 1
    %vm218 = vcmp.gt.s32.totalorder %v217, 0
    %v219 = vsel %vm218, %v217, 0
    %v220 = vshrl.u32 %v219, 5
    %v221 = vand.u32 %v219, 31
    %v222 = vsub.s32 32, %v221
    %v223 = vshrl.u32 683565275, %v222
    %v224 = vshll.u32 683565275, %v221
    %v225 = vshrl.u32 2475754826, %v222
    %v226 = vor.u32 %v224, %v225
    %v227 = vshll.u32 2475754826, %v221
    %v228 = vshrl.u32 2131351028, %v222
    %v229 = vor.u32 %v227, %v228
    %v230 = vshll.u32 2131351028, %v221
    %v231 = vshrl.u32 2102212464, %v222
    %v232 = vor.u32 %v230, %v231
    %v233 = vshll.u32 2102212464, %v221
    %v234 = vshrl.u32 920167782, %v222
    %v235 = vor.u32 %v233, %v234
    %v236 = vshll.u32 920167782, %v221
    %v237 = vshrl.u32 1326507024, %v222
    %v238 = vor.u32 %v236, %v237
    %vm239 = vcmp.lt.s32.totalorder %v220, 1
    %vm240 = vcmp.lt.s32.totalorder %v220, 2
    %vm241 = vcmp.lt.s32.totalorder %v220, 3
    %vm242 = vcmp.lt.s32.totalorder %v220, 4
    %v243 = vsel %vm239, %v223, %v226
    %v244 = vsel %vm242, %v232, 2102212464
    %v245 = vsel %vm241, %v229, %v244
    %v246 = vsel %vm240, %v243, %v245
    %v247 = vsel %vm239, %v226, %v229
    %v248 = vsel %vm242, %v235, 920167782
    %v249 = vsel %vm241, %v232, %v248
    %v250 = vsel %vm240, %v247, %v249
    %v251 = vsel %vm239, %v229, %v232
    %v252 = vsel %vm242, %v238, 1326507024
    %v253 = vsel %vm241, %v235, %v252
    %v254 = vsel %vm240, %v251, %v253
    %v255 = vshll.u32 %v215, 8
    %v256 = vmul.u32.u64.compose %v255, %v254
    %v257 = vextract.low.u32 %v256
    %v258 = vextract.high.u32 %v256
    %v259 = vmul.u32.u64.compose %v255, %v250
    %v260 = vextract.low.u32 %v259
    %v261 = vextract.high.u32 %v259
    %v262 = vmul.u32 %v255, %v246
    %v263 = vadd.s32 %v258, %v260
    %vm264 = vc.u32 %v258, %v260
    %v265 = vadd.s32 %v261, 1
    %v266 = vsel %vm264, %v265, %v261
    %v267 = vadd.s32 %v262, %v266
    %v268 = vadd.s32 %v267, 536870912
    %v269 = vshrl.u32 %v268, 30
    %v270 = vshll.u32 %v269, 30
    %v271 = vsub.s32 %v267, %v270
    %vm272 = vcmp.lt.s32.totalorder %v271, 0
    %v273 = vsub.s32 0, %v271
    %v274 = vsel %vm272, %v273, %v271
    %v275 = vclz %v274
    %v276 = vsub.s32 %v275, 2
    %vm277 = vcmp.gt.s32.totalorder 0, %v276
    %v278 = vsel %vm277, 0, %v276
    %v279 = vsub.s32 32, %v278
    %v280 = vshll.u32 %v271, %v278
    %v281 = vshrl.u32 %v263, %v279
    %v282 = vor.u32 %v280, %v281
    %v283 = vsub.s32 4294967266, %v278
    %v284 = vadd.s32 %v283, 127
    %v285 = vshll.u32 %v284, 23
    %v286 = vor.u32 4788187, %v285
    %v287 = vand.u32 2147483647, %v286
    %v289 = vcvt.s32.f32 %v282
    %v290 = vmul.f32 %v289, %v287
    %v291 = vxor.u32 %v290, 2147483648
    %v292 = vsel %vm209, %v291, %v290
    %v293 = vsub.s32 4, %v269
    %v294 = vsel %vm209, %v293, %v269
    %v295 = vsel %vm208, %v103, %v292
    %v296 = vsel %vm208, 0, %v294
    %v297 = vcosq.f32.pop %v295
    %v298 = vsinq.f32.pop %v295
    %vm299 = vweird.f32 %v103
    %v300 = vadd.s32 %v296, 3
    %v301 = vand.u32 %v300, 3
    %vm302 = vcmp.lt.s32.totalorder %v301, 2
    %vm303 = vcmp.eq.s32.totalorder %v301, 0
    %v304 = vxor.u32 %v298, 2147483648
    %v305 = vsel %vm303, %v297, %v304
    %vm306 = vcmp.eq.s32.totalorder %v301, 2
    %v307 = vxor.u32 %v297, 2147483648
    %v308 = vsel %vm306, %v307, %v298
    %v309 = vsel %vm302, %v305, %v308
    %v310 = vsel %vm299, nan, %v309
    %312 = vrot.lane.b32.xlu0 %v87, 120
    %v313 = vpop.permute.xlu0 %312
    %315 = vrot.lane.b32.xlu0 %v87, 8
    %v316 = vpop.permute.xlu0 %315
    %vm318 = vcmask 64512
    %v319 = vsel %vm318, %v313, %v316
    %321 = vset.pattern.permute.xlu0 0
    %322 = vperm.xlu0 %321, %v206
    %v323 = vpop.permute.xlu0 %322
    %v325 = vmul.f32 %v323, %v87
    %327 = vset.pattern.permute.xlu0 0
    %328 = vperm.xlu0 %327, %v310
    %v329 = vpop.permute.xlu0 %328
    %v331 = vmul.f32 %v329, 0.0
    %v332 = vadd.f32 %v325, %v331
    %v333 = vmul.f32 %v323, 0.0
    %v334 = vmul.f32 %v329, %v319
    %v335 = vsub.f32 %v333, %v334
    %337 = vrot.lane.b32.xlu0 %v332, 124
    %v338 = vpop.permute.xlu0 %337
    %340 = vrot.lane.b32.xlu0 %v332, 12
    %v341 = vpop.permute.xlu0 %340
    %vm343 = vcmask 97280
    %v344 = vsel %vm343, %v338, %v341
    %345 = vrot.lane.b32.xlu0 %v332, 116
    %v346 = vpop.permute.xlu0 %345
    %348 = vrot.lane.b32.xlu0 %v332, 4
    %v349 = vpop.permute.xlu0 %348
    %vm351 = vcmask 31744
    %v352 = vsel %vm351, %v346, %v349
    %v353 = vsel %vm92, 1, 0
    %v354 = vlaneseq
    %v355 = vshrl.u32 %v354, 7
    %v356 = vsub.s32 0, %v355
    %v357 = vrot.slane %v353, %v356
    %vm358 = vcmp.eq.s32.totalorder %v357, 1
    %v359 = vsel %vm358, %v344, %v352
    %361 = vrot.lane.b32.xlu0 %v335, 124
    %v362 = vpop.permute.xlu0 %361
    %364 = vrot.lane.b32.xlu0 %v335, 12
    %v365 = vpop.permute.xlu0 %364
    %v367 = vsel %vm343, %v362, %v365
    %368 = vrot.lane.b32.xlu0 %v335, 116
    %v369 = vpop.permute.xlu0 %368
    %371 = vrot.lane.b32.xlu0 %v335, 4
    %v372 = vpop.permute.xlu0 %371
    %v374 = vsel %vm351, %v369, %v372
    %v375 = vsel %vm358, %v367, %v374
    %376 = vset.pattern.permute.xlu0 1
    %377 = vperm.xlu0 %376, %v206
    %v378 = vpop.permute.xlu0 %377
    %v380 = vmul.f32 %v378, %v332
    %381 = vset.pattern.permute.xlu0 1
    %382 = vperm.xlu0 %381, %v310
    %v383 = vpop.permute.xlu0 %382
    %v385 = vmul.f32 %v383, %v375
    %v386 = vadd.f32 %v380, %v385
    %v387 = vmul.f32 %v378, %v335
    %v388 = vmul.f32 %v383, %v359
    %v389 = vsub.f32 %v387, %v388
    %391 = vrot.lane.b32.xlu0 %v386, 126
    %v392 = vpop.permute.xlu0 %391
    %394 = vrot.lane.b32.xlu0 %v386, 14
    %v395 = vpop.permute.xlu0 %394
    %vm397 = vcmask 113664
    %v398 = vsel %vm397, %v392, %v395
    %399 = vrot.lane.b32.xlu0 %v386, 114
    %v400 = vpop.permute.xlu0 %399
    %402 = vrot.lane.b32.xlu0 %v386, 2
    %v403 = vpop.permute.xlu0 %402
    %vm405 = vcmask 15360
    %v406 = vsel %vm405, %v400, %v403
    %v407 = vsel %vm93, 1, 0
    %v408 = vlaneseq
    %v409 = vshrl.u32 %v408, 7
    %v410 = vsub.s32 0, %v409
    %v411 = vrot.slane %v407, %v410
    %vm412 = vcmp.eq.s32.totalorder %v411, 1
    %v413 = vsel %vm412, %v398, %v406
    %415 = vrot.lane.b32.xlu0 %v389, 126
    %v416 = vpop.permute.xlu0 %415
    %418 = vrot.lane.b32.xlu0 %v389, 14
    %v419 = vpop.permute.xlu0 %418
    %v421 = vsel %vm397, %v416, %v419
    %422 = vrot.lane.b32.xlu0 %v389, 114
    %v423 = vpop.permute.xlu0 %422
    %425 = vrot.lane.b32.xlu0 %v389, 2
    %v426 = vpop.permute.xlu0 %425
    %v428 = vsel %vm405, %v423, %v426
    %v429 = vsel %vm412, %v421, %v428
    %430 = vset.pattern.permute.xlu0 2
    %431 = vperm.xlu0 %430, %v206
    %v432 = vpop.permute.xlu0 %431
    %v434 = vmul.f32 %v432, %v386
    %435 = vset.pattern.permute.xlu0 2
    %436 = vperm.xlu0 %435, %v310
    %v437 = vpop.permute.xlu0 %436
    %v439 = vmul.f32 %v437, %v429
    %v440 = vadd.f32 %v434, %v439
    %v441 = vmul.f32 %v432, %v389
    %v442 = vmul.f32 %v437, %v413
    %v443 = vsub.f32 %v441, %v442
    %445 = vrot.lane.b32.xlu0 %v440, 127
    %v446 = vpop.permute.xlu0 %445
    %448 = vrot.lane.b32.xlu0 %v440, 15
    %v449 = vpop.permute.xlu0 %448
    %vm451 = vcmask 121856
    %v452 = vsel %vm451, %v446, %v449
    %453 = vrot.lane.b32.xlu0 %v440, 113
    %v454 = vpop.permute.xlu0 %453
    %456 = vrot.lane.b32.xlu0 %v440, 1
    %v457 = vpop.permute.xlu0 %456
    %vm459 = vcmask 7168
    %v460 = vsel %vm459, %v454, %v457
    %v461 = vsel %vm94, 1, 0
    %v462 = vlaneseq
    %v463 = vshrl.u32 %v462, 7
    %v464 = vsub.s32 0, %v463
    %v465 = vrot.slane %v461, %v464
    %vm466 = vcmp.eq.s32.totalorder %v465, 1
    %v467 = vsel %vm466, %v452, %v460
    %469 = vrot.lane.b32.xlu0 %v443, 127
    %v470 = vpop.permute.xlu0 %469
    %472 = vrot.lane.b32.xlu0 %v443, 15
    %v473 = vpop.permute.xlu0 %472
    %v475 = vsel %vm451, %v470, %v473
    %476 = vrot.lane.b32.xlu0 %v443, 113
    %v477 = vpop.permute.xlu0 %476
    %479 = vrot.lane.b32.xlu0 %v443, 1
    %v480 = vpop.permute.xlu0 %479
    %v482 = vsel %vm459, %v477, %v480
    %v483 = vsel %vm466, %v475, %v482
    %484 = vset.pattern.permute.xlu0 3
    %485 = vperm.xlu0 %484, %v206
    %v486 = vpop.permute.xlu0 %485
    %v488 = vmul.f32 %v486, %v440
    %489 = vset.pattern.permute.xlu0 3
    %490 = vperm.xlu0 %489, %v310
    %v491 = vpop.permute.xlu0 %490
    %v493 = vmul.f32 %v491, %v483
    %v494 = vadd.f32 %v488, %v493
    %v495 = vmul.f32 %v486, %v443
    %v496 = vmul.f32 %v491, %v467
    %v497 = vsub.f32 %v495, %v496
    %s498 = sld [smem:[#allocation2]]
    %s499 = sld [smem:[#allocation5]]
    %v500 = vstv %s499
    %v501 = vmul.f32 %v500, %v96
    %v502 = vstv %s498
    %v503 = vmul.f32 %v502, %v494
    %v504 = vlaneseq
    %v505 = vshrl.u32 %v504, 7
    %v506 = vsub.s32 0, %v505
    %v507 = vrot.slane %v501, %v506
    %v508 = vmul.f32 %v507, %v497
    %v509 = vsub.f32 %v503, %v508
    %v510 = vmul.f32 %v507, %v494
    %v511 = vmul.f32 %v502, %v497
    %v512 = vadd.f32 %v510, %v511
    %s513 = sld [smem:[#allocation2 + $0x1]]
    %s514 = sld [smem:[#allocation5 + $0x1]]
    %v515 = vstv %s514
    %v516 = vmul.f32 %v515, %v98
    %v517 = vstv %s513
    %v518 = vmul.f32 %v517, %v509
    %v519 = vlaneseq
    %v520 = vshrl.u32 %v519, 7
    %v521 = vsub.s32 0, %v520
    %v522 = vrot.slane %v516, %v521
    %v523 = vmul.f32 %v522, %v512
    %v524 = vsub.f32 %v518, %v523
    %v525 = vmul.f32 %v522, %v509
    %v526 = vmul.f32 %v517, %v512
    %v527 = vadd.f32 %v525, %v526
    %s528 = sld [smem:[#allocation2 + $0x2]]
    %s529 = sld [smem:[#allocation5 + $0x2]]
    %v530 = vstv %s529
    %v531 = vmul.f32 %v530, %v100
    %v532 = vstv %s528
    %v533 = vmul.f32 %v532, %v524
    %v534 = vlaneseq
    %v535 = vshrl.u32 %v534, 7
    %v536 = vsub.s32 0, %v535
    %v537 = vrot.slane %v531, %v536
    %v538 = vmul.f32 %v537, %v527
    %v539 = vsub.f32 %v533, %v538
    %v540 = vmul.f32 %v537, %v524
    %v541 = vmul.f32 %v532, %v527
    %v542 = vadd.f32 %v540, %v541
    %s543 = sld [smem:[#allocation2 + $0x3]]
    %s544 = sld [smem:[#allocation5 + $0x3]]
    %v545 = vstv %s544
    %v546 = vmul.f32 %v545, %v102
    %v547 = vstv %s543
    %v548 = vmul.f32 %v547, %v539
    %v549 = vlaneseq
    %v550 = vshrl.u32 %v549, 7
    %v551 = vsub.s32 0, %v550
    %v552 = vrot.slane %v546, %v551
    %v553 = vmul.f32 %v552, %v542
    %v554 = vsub.f32 %v548, %v553
    %v555 = vmul.f32 %v552, %v539
    %v556 = vmul.f32 %v547, %v542
    %v557 = vadd.f32 %v555, %v556
    %s558 = sld [smem:[#allocation7]]
    %s559 = sld [smem:[#allocation8]]
    %v560 = vstv %s559
    %v561 = vmul.f32 %v560, %v96
    %563 = vrot.lane.b32.xlu0 %v554, 120
    %v564 = vpop.permute.xlu0 %563
    %566 = vrot.lane.b32.xlu0 %v554, 8
    %v567 = vpop.permute.xlu0 %566
    %v569 = vsel %vm318, %v564, %v567
    %571 = vrot.lane.b32.xlu0 %v557, 120
    %v572 = vpop.permute.xlu0 %571
    %574 = vrot.lane.b32.xlu0 %v557, 8
    %v575 = vpop.permute.xlu0 %574
    %v577 = vsel %vm318, %v572, %v575
    %v578 = vstv %s558
    %v579 = vmul.f32 %v578, %v554
    %v580 = vlaneseq
    %v581 = vshrl.u32 %v580, 7
    %v582 = vsub.s32 0, %v581
    %v583 = vrot.slane %v561, %v582
    %v584 = vmul.f32 %v583, %v569
    %v585 = vadd.f32 %v579, %v584
    %v586 = vmul.f32 %v578, %v557
    %v587 = vmul.f32 %v583, %v577
    %v588 = vadd.f32 %v586, %v587
    %s589 = sld [smem:[#allocation7 + $0x1]]
    %s590 = sld [smem:[#allocation8 + $0x1]]
    %v591 = vstv %s590
    %v592 = vmul.f32 %v591, %v98
    %594 = vrot.lane.b32.xlu0 %v585, 124
    %v595 = vpop.permute.xlu0 %594
    %597 = vrot.lane.b32.xlu0 %v585, 12
    %v598 = vpop.permute.xlu0 %597
    %v600 = vsel %vm343, %v595, %v598
    %601 = vrot.lane.b32.xlu0 %v585, 116
    %v602 = vpop.permute.xlu0 %601
    %604 = vrot.lane.b32.xlu0 %v585, 4
    %v605 = vpop.permute.xlu0 %604
    %v607 = vsel %vm351, %v602, %v605
    %v608 = vsel %vm358, %v600, %v607
    %610 = vrot.lane.b32.xlu0 %v588, 124
    %v611 = vpop.permute.xlu0 %610
    %613 = vrot.lane.b32.xlu0 %v588, 12
    %v614 = vpop.permute.xlu0 %613
    %v616 = vsel %vm343, %v611, %v614
    %617 = vrot.lane.b32.xlu0 %v588, 116
    %v618 = vpop.permute.xlu0 %617
    %620 = vrot.lane.b32.xlu0 %v588, 4
    %v621 = vpop.permute.xlu0 %620
    %v623 = vsel %vm351, %v618, %v621
    %v624 = vsel %vm358, %v616, %v623
    %v625 = vstv %s589
    %v626 = vmul.f32 %v625, %v585
    %v627 = vlaneseq
    %v628 = vshrl.u32 %v627, 7
    %v629 = vsub.s32 0, %v628
    %v630 = vrot.slane %v592, %v629
    %v631 = vmul.f32 %v630, %v608
    %v632 = vadd.f32 %v626, %v631
    %v633 = vmul.f32 %v625, %v588
    %v634 = vmul.f32 %v630, %v624
    %v635 = vadd.f32 %v633, %v634
    %s636 = sld [smem:[#allocation7 + $0x2]]
    %s637 = sld [smem:[#allocation8 + $0x2]]
    %v638 = vstv %s637
    %v639 = vmul.f32 %v638, %v100
    %641 = vrot.lane.b32.xlu0 %v632, 126
    %v642 = vpop.permute.xlu0 %641
    %644 = vrot.lane.b32.xlu0 %v632, 14
    %v645 = vpop.permute.xlu0 %644
    %v647 = vsel %vm397, %v642, %v645
    %648 = vrot.lane.b32.xlu0 %v632, 114
    %v649 = vpop.permute.xlu0 %648
    %651 = vrot.lane.b32.xlu0 %v632, 2
    %v652 = vpop.permute.xlu0 %651
    %v654 = vsel %vm405, %v649, %v652
    %v655 = vsel %vm412, %v647, %v654
    %657 = vrot.lane.b32.xlu0 %v635, 126
    %v658 = vpop.permute.xlu0 %657
    %660 = vrot.lane.b32.xlu0 %v635, 14
    %v661 = vpop.permute.xlu0 %660
    %v663 = vsel %vm397, %v658, %v661
    %664 = vrot.lane.b32.xlu0 %v635, 114
    %v665 = vpop.permute.xlu0 %664
    %667 = vrot.lane.b32.xlu0 %v635, 2
    %v668 = vpop.permute.xlu0 %667
    %v670 = vsel %vm405, %v665, %v668
    %v671 = vsel %vm412, %v663, %v670
    %v672 = vstv %s636
    %v673 = vmul.f32 %v672, %v632
    %v674 = vlaneseq
    %v675 = vshrl.u32 %v674, 7
    %v676 = vsub.s32 0, %v675
    %v677 = vrot.slane %v639, %v676
    %v678 = vmul.f32 %v677, %v655
    %v679 = vadd.f32 %v673, %v678
    %v680 = vmul.f32 %v672, %v635
    %v681 = vmul.f32 %v677, %v671
    %v682 = vadd.f32 %v680, %v681
    %s683 = sld [smem:[#allocation7 + $0x3]]
    %s684 = sld [smem:[#allocation8 + $0x3]]
    %v685 = vstv %s684
    %v686 = vmul.f32 %v685, %v102
    %688 = vrot.lane.b32.xlu0 %v679, 127
    %v689 = vpop.permute.xlu0 %688
    %691 = vrot.lane.b32.xlu0 %v679, 15
    %v692 = vpop.permute.xlu0 %691
    %v694 = vsel %vm451, %v689, %v692
    %695 = vrot.lane.b32.xlu0 %v679, 113
    %v696 = vpop.permute.xlu0 %695
    %698 = vrot.lane.b32.xlu0 %v679, 1
    %v699 = vpop.permute.xlu0 %698
    %v701 = vsel %vm459, %v696, %v699
    %v702 = vsel %vm466, %v694, %v701
    %704 = vrot.lane.b32.xlu0 %v682, 127
    %v705 = vpop.permute.xlu0 %704
    %707 = vrot.lane.b32.xlu0 %v682, 15
    %v708 = vpop.permute.xlu0 %707
    %v710 = vsel %vm451, %v705, %v708
    %711 = vrot.lane.b32.xlu0 %v682, 113
    %v712 = vpop.permute.xlu0 %711
    %714 = vrot.lane.b32.xlu0 %v682, 1
    %v715 = vpop.permute.xlu0 %714
    %v717 = vsel %vm459, %v712, %v715
    %v718 = vsel %vm466, %v710, %v717
    %v719 = vstv %s683
    %v720 = vmul.f32 %v719, %v679
    %v721 = vlaneseq
    %v722 = vshrl.u32 %v721, 7
    %v723 = vsub.s32 0, %v722
    %v724 = vrot.slane %v686, %v723
    %v725 = vmul.f32 %v724, %v702
    %v726 = vadd.f32 %v720, %v725
    %v727 = vmul.f32 %v719, %v682
    %v728 = vmul.f32 %v724, %v718
    %v729 = vadd.f32 %v727, %v728
    %v730 = vld [vmem:[%s7] sm:$0x1]
    %v732 = vlaneseq
    %v733 = vshrl.u32 %v732, 7
    %v734 = vsub.s32 0, %v733
    %v735 = vrot.slane %v730, %v734
    %v737 = vmul.f32 %v726, %v735
    %v738 = vmul.f32 %v729, %v735
    %s739 = scalar_lea.vmem %s0, 8
    %v740 = vld [vmem:[%s739] sm:$0xff]
    %v741 = vand.u32 2147483647, %v740
    %vm742 = vcmp.le.f32.partialorder %v741, 0.7853982
    %vm743 = vcmp.lt.s32.totalorder %v740, 0
    %v744 = vand.u32 %v740, 2139095040
    %v745 = vshrl.u32 %v744, 23
    %v746 = vsub.s32 %v745, 127
    %v747 = vand.u32 2147483647, %v740
    %v748 = vand.u32 %v747, 8388607
    %v749 = vor.u32 %v748, 8388608
    %v750 = vsub.s32 0, %v749
    %v751 = vadd.s32 %v746, 1
    %vm752 = vcmp.gt.s32.totalorder %v751, 0
    %v753 = vsel %vm752, %v751, 0
    %v754 = vshrl.u32 %v753, 5
    %v755 = vand.u32 %v753, 31
    %v756 = vsub.s32 32, %v755
    %v757 = vshrl.u32 683565275, %v756
    %v758 = vshll.u32 683565275, %v755
    %v759 = vshrl.u32 2475754826, %v756
    %v760 = vor.u32 %v758, %v759
    %v761 = vshll.u32 2475754826, %v755
    %v762 = vshrl.u32 2131351028, %v756
    %v763 = vor.u32 %v761, %v762
    %v764 = vshll.u32 2131351028, %v755
    %v765 = vshrl.u32 2102212464, %v756
    %v766 = vor.u32 %v764, %v765
    %v767 = vshll.u32 2102212464, %v755
    %v768 = vshrl.u32 920167782, %v756
    %v769 = vor.u32 %v767, %v768
    %v770 = vshll.u32 920167782, %v755
    %v771 = vshrl.u32 1326507024, %v756
    %v772 = vor.u32 %v770, %v771
    %vm773 = vcmp.lt.s32.totalorder %v754, 1
    %vm774 = vcmp.lt.s32.totalorder %v754, 2
    %vm775 = vcmp.lt.s32.totalorder %v754, 3
    %vm776 = vcmp.lt.s32.totalorder %v754, 4
    %v777 = vsel %vm773, %v757, %v760
    %v778 = vsel %vm776, %v766, 2102212464
    %v779 = vsel %vm775, %v763, %v778
    %v780 = vsel %vm774, %v777, %v779
    %v781 = vsel %vm773, %v760, %v763
    %v782 = vsel %vm776, %v769, 920167782
    %v783 = vsel %vm775, %v766, %v782
    %v784 = vsel %vm774, %v781, %v783
    %v785 = vsel %vm773, %v763, %v766
    %v786 = vsel %vm776, %v772, 1326507024
    %v787 = vsel %vm775, %v769, %v786
    %v788 = vsel %vm774, %v785, %v787
    %v789 = vshll.u32 %v749, 8
    %v790 = vmul.u32.u64.compose %v789, %v788
    %v791 = vextract.low.u32 %v790
    %v792 = vextract.high.u32 %v790
    %v793 = vmul.u32.u64.compose %v789, %v784
    %v794 = vextract.low.u32 %v793
    %v795 = vextract.high.u32 %v793
    %v796 = vmul.u32 %v789, %v780
    %v797 = vadd.s32 %v792, %v794
    %vm798 = vc.u32 %v792, %v794
    %v799 = vadd.s32 %v795, 1
    %v800 = vsel %vm798, %v799, %v795
    %v801 = vadd.s32 %v796, %v800
    %v802 = vadd.s32 %v801, 536870912
    %v803 = vshrl.u32 %v802, 30
    %v804 = vshll.u32 %v803, 30
    %v805 = vsub.s32 %v801, %v804
    %vm806 = vcmp.lt.s32.totalorder %v805, 0
    %v807 = vsub.s32 0, %v805
    %v808 = vsel %vm806, %v807, %v805
    %v809 = vclz %v808
    %v810 = vsub.s32 %v809, 2
    %vm811 = vcmp.gt.s32.totalorder 0, %v810
    %v812 = vsel %vm811, 0, %v810
    %v813 = vsub.s32 32, %v812
    %v814 = vshll.u32 %v805, %v812
    %v815 = vshrl.u32 %v797, %v813
    %v816 = vor.u32 %v814, %v815
    %v817 = vsub.s32 4294967266, %v812
    %v818 = vadd.s32 %v817, 127
    %v819 = vshll.u32 %v818, 23
    %v820 = vor.u32 4788187, %v819
    %v821 = vand.u32 2147483647, %v820
    %v823 = vcvt.s32.f32 %v816
    %v824 = vmul.f32 %v823, %v821
    %v825 = vxor.u32 %v824, 2147483648
    %v826 = vsel %vm743, %v825, %v824
    %v827 = vsub.s32 4, %v803
    %v828 = vsel %vm743, %v827, %v803
    %v829 = vsel %vm742, %v740, %v826
    %v830 = vsel %vm742, 0, %v828
    %v831 = vcosq.f32.pop %v829
    %v832 = vsinq.f32.pop %v829
    %vm833 = vweird.f32 %v740
    %v834 = vand.u32 %v830, 3
    %vm835 = vcmp.lt.s32.totalorder %v834, 2
    %vm836 = vcmp.eq.s32.totalorder %v834, 0
    %v837 = vxor.u32 %v832, 2147483648
    %v838 = vsel %vm836, %v831, %v837
    %vm839 = vcmp.eq.s32.totalorder %v834, 2
    %v840 = vxor.u32 %v831, 2147483648
    %v841 = vsel %vm839, %v840, %v832
    %v842 = vsel %vm835, %v838, %v841
    %v843 = vsel %vm833, nan, %v842
    %v844 = vand.u32 2147483647, %v740
    %vm845 = vcmp.le.f32.partialorder %v844, 0.7853982
    %vm846 = vcmp.lt.s32.totalorder %v740, 0
    %v847 = vand.u32 %v740, 2139095040
    %v848 = vshrl.u32 %v847, 23
    %v849 = vsub.s32 %v848, 127
    %v850 = vand.u32 2147483647, %v740
    %v851 = vand.u32 %v850, 8388607
    %v852 = vor.u32 %v851, 8388608
    %v853 = vsub.s32 0, %v852
    %v854 = vadd.s32 %v849, 1
    %vm855 = vcmp.gt.s32.totalorder %v854, 0
    %v856 = vsel %vm855, %v854, 0
    %v857 = vshrl.u32 %v856, 5
    %v858 = vand.u32 %v856, 31
    %v859 = vsub.s32 32, %v858
    %v860 = vshrl.u32 683565275, %v859
    %v861 = vshll.u32 683565275, %v858
    %v862 = vshrl.u32 2475754826, %v859
    %v863 = vor.u32 %v861, %v862
    %v864 = vshll.u32 2475754826, %v858
    %v865 = vshrl.u32 2131351028, %v859
    %v866 = vor.u32 %v864, %v865
    %v867 = vshll.u32 2131351028, %v858
    %v868 = vshrl.u32 2102212464, %v859
    %v869 = vor.u32 %v867, %v868
    %v870 = vshll.u32 2102212464, %v858
    %v871 = vshrl.u32 920167782, %v859
    %v872 = vor.u32 %v870, %v871
    %v873 = vshll.u32 920167782, %v858
    %v874 = vshrl.u32 1326507024, %v859
    %v875 = vor.u32 %v873, %v874
    %vm876 = vcmp.lt.s32.totalorder %v857, 1
    %vm877 = vcmp.lt.s32.totalorder %v857, 2
    %vm878 = vcmp.lt.s32.totalorder %v857, 3
    %vm879 = vcmp.lt.s32.totalorder %v857, 4
    %v880 = vsel %vm876, %v860, %v863
    %v881 = vsel %vm879, %v869, 2102212464
    %v882 = vsel %vm878, %v866, %v881
    %v883 = vsel %vm877, %v880, %v882
    %v884 = vsel %vm876, %v863, %v866
    %v885 = vsel %vm879, %v872, 920167782
    %v886 = vsel %vm878, %v869, %v885
    %v887 = vsel %vm877, %v884, %v886
    %v888 = vsel %vm876, %v866, %v869
    %v889 = vsel %vm879, %v875, 1326507024
    %v890 = vsel %vm878, %v872, %v889
    %v891 = vsel %vm877, %v888, %v890
    %v892 = vshll.u32 %v852, 8
    %v893 = vmul.u32.u64.compose %v892, %v891
    %v894 = vextract.low.u32 %v893
    %v895 = vextract.high.u32 %v893
    %v896 = vmul.u32.u64.compose %v892, %v887
    %v897 = vextract.low.u32 %v896
    %v898 = vextract.high.u32 %v896
    %v899 = vmul.u32 %v892, %v883
    %v900 = vadd.s32 %v895, %v897
    %vm901 = vc.u32 %v895, %v897
    %v902 = vadd.s32 %v898, 1
    %v903 = vsel %vm901, %v902, %v898
    %v904 = vadd.s32 %v899, %v903
    %v905 = vadd.s32 %v904, 536870912
    %v906 = vshrl.u32 %v905, 30
    %v907 = vshll.u32 %v906, 30
    %v908 = vsub.s32 %v904, %v907
    %vm909 = vcmp.lt.s32.totalorder %v908, 0
    %v910 = vsub.s32 0, %v908
    %v911 = vsel %vm909, %v910, %v908
    %v912 = vclz %v911
    %v913 = vsub.s32 %v912, 2
    %vm914 = vcmp.gt.s32.totalorder 0, %v913
    %v915 = vsel %vm914, 0, %v913
    %v916 = vsub.s32 32, %v915
    %v917 = vshll.u32 %v908, %v915
    %v918 = vshrl.u32 %v900, %v916
    %v919 = vor.u32 %v917, %v918
    %v920 = vsub.s32 4294967266, %v915
    %v921 = vadd.s32 %v920, 127
    %v922 = vshll.u32 %v921, 23
    %v923 = vor.u32 4788187, %v922
    %v924 = vand.u32 2147483647, %v923
    %v926 = vcvt.s32.f32 %v919
    %v927 = vmul.f32 %v926, %v924
    %v928 = vxor.u32 %v927, 2147483648
    %v929 = vsel %vm846, %v928, %v927
    %v930 = vsub.s32 4, %v906
    %v931 = vsel %vm846, %v930, %v906
    %v932 = vsel %vm845, %v740, %v929
    %v933 = vsel %vm845, 0, %v931
    %v934 = vcosq.f32.pop %v932
    %v935 = vsinq.f32.pop %v932
    %vm936 = vweird.f32 %v740
    %v937 = vadd.s32 %v933, 3
    %v938 = vand.u32 %v937, 3
    %vm939 = vcmp.lt.s32.totalorder %v938, 2
    %vm940 = vcmp.eq.s32.totalorder %v938, 0
    %v941 = vxor.u32 %v935, 2147483648
    %v942 = vsel %vm940, %v934, %v941
    %vm943 = vcmp.eq.s32.totalorder %v938, 2
    %v944 = vxor.u32 %v934, 2147483648
    %v945 = vsel %vm943, %v944, %v935
    %v946 = vsel %vm939, %v942, %v945
    %v947 = vsel %vm936, nan, %v946
    %949 = vrot.lane.b32.xlu0 %v737, 120
    %v950 = vpop.permute.xlu0 %949
    %952 = vrot.lane.b32.xlu0 %v737, 8
    %v953 = vpop.permute.xlu0 %952
    %v955 = vsel %vm318, %v950, %v953
    %957 = vrot.lane.b32.xlu0 %v738, 120
    %v958 = vpop.permute.xlu0 %957
    %960 = vrot.lane.b32.xlu0 %v738, 8
    %v961 = vpop.permute.xlu0 %960
    %v963 = vsel %vm318, %v958, %v961
    %965 = vset.pattern.permute.xlu0 0
    %966 = vperm.xlu0 %965, %v843
    %v967 = vpop.permute.xlu0 %966
    %v969 = vmul.f32 %v967, %v737
    %971 = vset.pattern.permute.xlu0 0
    %972 = vperm.xlu0 %971, %v947
    %v973 = vpop.permute.xlu0 %972
    %v975 = vmul.f32 %v973, %v963
    %v976 = vadd.f32 %v969, %v975
    %v977 = vmul.f32 %v967, %v738
    %v978 = vmul.f32 %v973, %v955
    %v979 = vsub.f32 %v977, %v978
    %981 = vrot.lane.b32.xlu0 %v976, 124
    %v982 = vpop.permute.xlu0 %981
    %984 = vrot.lane.b32.xlu0 %v976, 12
    %v985 = vpop.permute.xlu0 %984
    %v987 = vsel %vm343, %v982, %v985
    %988 = vrot.lane.b32.xlu0 %v976, 116
    %v989 = vpop.permute.xlu0 %988
    %991 = vrot.lane.b32.xlu0 %v976, 4
    %v992 = vpop.permute.xlu0 %991
    %v994 = vsel %vm351, %v989, %v992
    %v995 = vsel %vm358, %v987, %v994
    %997 = vrot.lane.b32.xlu0 %v979, 124
    %v998 = vpop.permute.xlu0 %997
    %1000 = vrot.lane.b32.xlu0 %v979, 12
    %v1001 = vpop.permute.xlu0 %1000
    %v1003 = vsel %vm343, %v998, %v1001
    %1004 = vrot.lane.b32.xlu0 %v979, 116
    %v1005 = vpop.permute.xlu0 %1004
    %1007 = vrot.lane.b32.xlu0 %v979, 4
    %v1008 = vpop.permute.xlu0 %1007
    %v1010 = vsel %vm351, %v1005, %v1008
    %v1011 = vsel %vm358, %v1003, %v1010
    %1012 = vset.pattern.permute.xlu0 1
    %1013 = vperm.xlu0 %1012, %v843
    %v1014 = vpop.permute.xlu0 %1013
    %v1016 = vmul.f32 %v1014, %v976
    %1017 = vset.pattern.permute.xlu0 1
    %1018 = vperm.xlu0 %1017, %v947
    %v1019 = vpop.permute.xlu0 %1018
    %v1021 = vmul.f32 %v1019, %v1011
    %v1022 = vadd.f32 %v1016, %v1021
    %v1023 = vmul.f32 %v1014, %v979
    %v1024 = vmul.f32 %v1019, %v995
    %v1025 = vsub.f32 %v1023, %v1024
    %1027 = vrot.lane.b32.xlu0 %v1022, 126
    %v1028 = vpop.permute.xlu0 %1027
    %1030 = vrot.lane.b32.xlu0 %v1022, 14
    %v1031 = vpop.permute.xlu0 %1030
    %v1033 = vsel %vm397, %v1028, %v1031
    %1034 = vrot.lane.b32.xlu0 %v1022, 114
    %v1035 = vpop.permute.xlu0 %1034
    %1037 = vrot.lane.b32.xlu0 %v1022, 2
    %v1038 = vpop.permute.xlu0 %1037
    %v1040 = vsel %vm405, %v1035, %v1038
    %v1041 = vsel %vm412, %v1033, %v1040
    %1043 = vrot.lane.b32.xlu0 %v1025, 126
    %v1044 = vpop.permute.xlu0 %1043
    %1046 = vrot.lane.b32.xlu0 %v1025, 14
    %v1047 = vpop.permute.xlu0 %1046
    %v1049 = vsel %vm397, %v1044, %v1047
    %1050 = vrot.lane.b32.xlu0 %v1025, 114
    %v1051 = vpop.permute.xlu0 %1050
    %1053 = vrot.lane.b32.xlu0 %v1025, 2
    %v1054 = vpop.permute.xlu0 %1053
    %v1056 = vsel %vm405, %v1051, %v1054
    %v1057 = vsel %vm412, %v1049, %v1056
    %1058 = vset.pattern.permute.xlu0 2
    %1059 = vperm.xlu0 %1058, %v843
    %v1060 = vpop.permute.xlu0 %1059
    %v1062 = vmul.f32 %v1060, %v1022
    %1063 = vset.pattern.permute.xlu0 2
    %1064 = vperm.xlu0 %1063, %v947
    %v1065 = vpop.permute.xlu0 %1064
    %v1067 = vmul.f32 %v1065, %v1057
    %v1068 = vadd.f32 %v1062, %v1067
    %v1069 = vmul.f32 %v1060, %v1025
    %v1070 = vmul.f32 %v1065, %v1041
    %v1071 = vsub.f32 %v1069, %v1070
    %1073 = vrot.lane.b32.xlu0 %v1068, 127
    %v1074 = vpop.permute.xlu0 %1073
    %1076 = vrot.lane.b32.xlu0 %v1068, 15
    %v1077 = vpop.permute.xlu0 %1076
    %v1079 = vsel %vm451, %v1074, %v1077
    %1080 = vrot.lane.b32.xlu0 %v1068, 113
    %v1081 = vpop.permute.xlu0 %1080
    %1083 = vrot.lane.b32.xlu0 %v1068, 1
    %v1084 = vpop.permute.xlu0 %1083
    %v1086 = vsel %vm459, %v1081, %v1084
    %v1087 = vsel %vm466, %v1079, %v1086
    %1089 = vrot.lane.b32.xlu0 %v1071, 127
    %v1090 = vpop.permute.xlu0 %1089
    %1092 = vrot.lane.b32.xlu0 %v1071, 15
    %v1093 = vpop.permute.xlu0 %1092
    %v1095 = vsel %vm451, %v1090, %v1093
    %1096 = vrot.lane.b32.xlu0 %v1071, 113
    %v1097 = vpop.permute.xlu0 %1096
    %1099 = vrot.lane.b32.xlu0 %v1071, 1
    %v1100 = vpop.permute.xlu0 %1099
    %v1102 = vsel %vm459, %v1097, %v1100
    %v1103 = vsel %vm466, %v1095, %v1102
    %1104 = vset.pattern.permute.xlu0 3
    %1105 = vperm.xlu0 %1104, %v843
    %v1106 = vpop.permute.xlu0 %1105
    %v1108 = vmul.f32 %v1106, %v1068
    %1109 = vset.pattern.permute.xlu0 3
    %1110 = vperm.xlu0 %1109, %v947
    %v1111 = vpop.permute.xlu0 %1110
    %v1113 = vmul.f32 %v1111, %v1103
    %v1114 = vadd.f32 %v1108, %v1113
    %v1115 = vmul.f32 %v1106, %v1071
    %v1116 = vmul.f32 %v1111, %v1087
    %v1117 = vsub.f32 %v1115, %v1116
    %s1118 = sld [smem:[#allocation2 + $0x80]]
    %s1119 = sld [smem:[#allocation5 + $0x80]]
    %v1120 = vstv %s1119
    %v1121 = vmul.f32 %v1120, %v96
    %v1122 = vstv %s1118
    %v1123 = vmul.f32 %v1122, %v1114
    %v1124 = vlaneseq
    %v1125 = vshrl.u32 %v1124, 7
    %v1126 = vsub.s32 0, %v1125
    %v1127 = vrot.slane %v1121, %v1126
    %v1128 = vmul.f32 %v1127, %v1117
    %v1129 = vsub.f32 %v1123, %v1128
    %v1130 = vmul.f32 %v1127, %v1114
    %v1131 = vmul.f32 %v1122, %v1117
    %v1132 = vadd.f32 %v1130, %v1131
    %s1133 = sld [smem:[#allocation2 + $0x81]]
    %s1134 = sld [smem:[#allocation5 + $0x81]]
    %v1135 = vstv %s1134
    %v1136 = vmul.f32 %v1135, %v98
    %v1137 = vstv %s1133
    %v1138 = vmul.f32 %v1137, %v1129
    %v1139 = vlaneseq
    %v1140 = vshrl.u32 %v1139, 7
    %v1141 = vsub.s32 0, %v1140
    %v1142 = vrot.slane %v1136, %v1141
    %v1143 = vmul.f32 %v1142, %v1132
    %v1144 = vsub.f32 %v1138, %v1143
    %v1145 = vmul.f32 %v1142, %v1129
    %v1146 = vmul.f32 %v1137, %v1132
    %v1147 = vadd.f32 %v1145, %v1146
    %s1148 = sld [smem:[#allocation2 + $0x82]]
    %s1149 = sld [smem:[#allocation5 + $0x82]]
    %v1150 = vstv %s1149
    %v1151 = vmul.f32 %v1150, %v100
    %v1152 = vstv %s1148
    %v1153 = vmul.f32 %v1152, %v1144
    %v1154 = vlaneseq
    %v1155 = vshrl.u32 %v1154, 7
    %v1156 = vsub.s32 0, %v1155
    %v1157 = vrot.slane %v1151, %v1156
    %v1158 = vmul.f32 %v1157, %v1147
    %v1159 = vsub.f32 %v1153, %v1158
    %v1160 = vmul.f32 %v1157, %v1144
    %v1161 = vmul.f32 %v1152, %v1147
    %v1162 = vadd.f32 %v1160, %v1161
    %s1163 = sld [smem:[#allocation2 + $0x83]]
    %s1164 = sld [smem:[#allocation5 + $0x83]]
    %v1165 = vstv %s1164
    %v1166 = vmul.f32 %v1165, %v102
    %v1167 = vstv %s1163
    %v1168 = vmul.f32 %v1167, %v1159
    %v1169 = vlaneseq
    %v1170 = vshrl.u32 %v1169, 7
    %v1171 = vsub.s32 0, %v1170
    %v1172 = vrot.slane %v1166, %v1171
    %v1173 = vmul.f32 %v1172, %v1162
    %v1174 = vsub.f32 %v1168, %v1173
    %v1175 = vmul.f32 %v1172, %v1159
    %v1176 = vmul.f32 %v1167, %v1162
    %v1177 = vadd.f32 %v1175, %v1176
    %s1178 = sld [smem:[#allocation7 + $0x80]]
    %s1179 = sld [smem:[#allocation8 + $0x80]]
    %v1180 = vstv %s1179
    %v1181 = vmul.f32 %v1180, %v96
    %1183 = vrot.lane.b32.xlu0 %v1174, 120
    %v1184 = vpop.permute.xlu0 %1183
    %1186 = vrot.lane.b32.xlu0 %v1174, 8
    %v1187 = vpop.permute.xlu0 %1186
    %v1189 = vsel %vm318, %v1184, %v1187
    %1191 = vrot.lane.b32.xlu0 %v1177, 120
    %v1192 = vpop.permute.xlu0 %1191
    %1194 = vrot.lane.b32.xlu0 %v1177, 8
    %v1195 = vpop.permute.xlu0 %1194
    %v1197 = vsel %vm318, %v1192, %v1195
    %v1198 = vstv %s1178
    %v1199 = vmul.f32 %v1198, %v1174
    %v1200 = vlaneseq
    %v1201 = vshrl.u32 %v1200, 7
    %v1202 = vsub.s32 0, %v1201
    %v1203 = vrot.slane %v1181, %v1202
    %v1204 = vmul.f32 %v1203, %v1189
    %v1205 = vadd.f32 %v1199, %v1204
    %v1206 = vmul.f32 %v1198, %v1177
    %v1207 = vmul.f32 %v1203, %v1197
    %v1208 = vadd.f32 %v1206, %v1207
    %s1209 = sld [smem:[#allocation7 + $0x81]]
    %s1210 = sld [smem:[#allocation8 + $0x81]]
    %v1211 = vstv %s1210
    %v1212 = vmul.f32 %v1211, %v98
    %1214 = vrot.lane.b32.xlu0 %v1205, 124
    %v1215 = vpop.permute.xlu0 %1214
    %1217 = vrot.lane.b32.xlu0 %v1205, 12
    %v1218 = vpop.permute.xlu0 %1217
    %v1220 = vsel %vm343, %v1215, %v1218
    %1221 = vrot.lane.b32.xlu0 %v1205, 116
    %v1222 = vpop.permute.xlu0 %1221
    %1224 = vrot.lane.b32.xlu0 %v1205, 4
    %v1225 = vpop.permute.xlu0 %1224
    %v1227 = vsel %vm351, %v1222, %v1225
    %v1228 = vsel %vm358, %v1220, %v1227
    %1230 = vrot.lane.b32.xlu0 %v1208, 124
    %v1231 = vpop.permute.xlu0 %1230
    %1233 = vrot.lane.b32.xlu0 %v1208, 12
    %v1234 = vpop.permute.xlu0 %1233
    %v1236 = vsel %vm343, %v1231, %v1234
    %1237 = vrot.lane.b32.xlu0 %v1208, 116
    %v1238 = vpop.permute.xlu0 %1237
    %1240 = vrot.lane.b32.xlu0 %v1208, 4
    %v1241 = vpop.permute.xlu0 %1240
    %v1243 = vsel %vm351, %v1238, %v1241
    %v1244 = vsel %vm358, %v1236, %v1243
    %v1245 = vstv %s1209
    %v1246 = vmul.f32 %v1245, %v1205
    %v1247 = vlaneseq
    %v1248 = vshrl.u32 %v1247, 7
    %v1249 = vsub.s32 0, %v1248
    %v1250 = vrot.slane %v1212, %v1249
    %v1251 = vmul.f32 %v1250, %v1228
    %v1252 = vadd.f32 %v1246, %v1251
    %v1253 = vmul.f32 %v1245, %v1208
    %v1254 = vmul.f32 %v1250, %v1244
    %v1255 = vadd.f32 %v1253, %v1254
    %s1256 = sld [smem:[#allocation7 + $0x82]]
    %s1257 = sld [smem:[#allocation8 + $0x82]]
    %v1258 = vstv %s1257
    %v1259 = vmul.f32 %v1258, %v100
    %1261 = vrot.lane.b32.xlu0 %v1252, 126
    %v1262 = vpop.permute.xlu0 %1261
    %1264 = vrot.lane.b32.xlu0 %v1252, 14
    %v1265 = vpop.permute.xlu0 %1264
    %v1267 = vsel %vm397, %v1262, %v1265
    %1268 = vrot.lane.b32.xlu0 %v1252, 114
    %v1269 = vpop.permute.xlu0 %1268
    %1271 = vrot.lane.b32.xlu0 %v1252, 2
    %v1272 = vpop.permute.xlu0 %1271
    %v1274 = vsel %vm405, %v1269, %v1272
    %v1275 = vsel %vm412, %v1267, %v1274
    %1277 = vrot.lane.b32.xlu0 %v1255, 126
    %v1278 = vpop.permute.xlu0 %1277
    %1280 = vrot.lane.b32.xlu0 %v1255, 14
    %v1281 = vpop.permute.xlu0 %1280
    %v1283 = vsel %vm397, %v1278, %v1281
    %1284 = vrot.lane.b32.xlu0 %v1255, 114
    %v1285 = vpop.permute.xlu0 %1284
    %1287 = vrot.lane.b32.xlu0 %v1255, 2
    %v1288 = vpop.permute.xlu0 %1287
    %v1290 = vsel %vm405, %v1285, %v1288
    %v1291 = vsel %vm412, %v1283, %v1290
    %v1292 = vstv %s1256
    %v1293 = vmul.f32 %v1292, %v1252
    %v1294 = vlaneseq
    %v1295 = vshrl.u32 %v1294, 7
    %v1296 = vsub.s32 0, %v1295
    %v1297 = vrot.slane %v1259, %v1296
    %v1298 = vmul.f32 %v1297, %v1275
    %v1299 = vadd.f32 %v1293, %v1298
    %v1300 = vmul.f32 %v1292, %v1255
    %v1301 = vmul.f32 %v1297, %v1291
    %v1302 = vadd.f32 %v1300, %v1301
    %s1303 = sld [smem:[#allocation7 + $0x83]]
    %s1304 = sld [smem:[#allocation8 + $0x83]]
    %v1305 = vstv %s1304
    %v1306 = vmul.f32 %v1305, %v102
    %1308 = vrot.lane.b32.xlu0 %v1299, 127
    %v1309 = vpop.permute.xlu0 %1308
    %1311 = vrot.lane.b32.xlu0 %v1299, 15
    %v1312 = vpop.permute.xlu0 %1311
    %v1314 = vsel %vm451, %v1309, %v1312
    %1315 = vrot.lane.b32.xlu0 %v1299, 113
    %v1316 = vpop.permute.xlu0 %1315
    %1318 = vrot.lane.b32.xlu0 %v1299, 1
    %v1319 = vpop.permute.xlu0 %1318
    %v1321 = vsel %vm459, %v1316, %v1319
    %v1322 = vsel %vm466, %v1314, %v1321
    %1324 = vrot.lane.b32.xlu0 %v1302, 127
    %v1325 = vpop.permute.xlu0 %1324
    %1327 = vrot.lane.b32.xlu0 %v1302, 15
    %v1328 = vpop.permute.xlu0 %1327
    %v1330 = vsel %vm451, %v1325, %v1328
    %1331 = vrot.lane.b32.xlu0 %v1302, 113
    %v1332 = vpop.permute.xlu0 %1331
    %1334 = vrot.lane.b32.xlu0 %v1302, 1
    %v1335 = vpop.permute.xlu0 %1334
    %v1337 = vsel %vm459, %v1332, %v1335
    %v1338 = vsel %vm466, %v1330, %v1337
    %v1339 = vstv %s1303
    %v1340 = vmul.f32 %v1339, %v1299
    %v1341 = vlaneseq
    %v1342 = vshrl.u32 %v1341, 7
    %v1343 = vsub.s32 0, %v1342
    %v1344 = vrot.slane %v1306, %v1343
    %v1345 = vmul.f32 %v1344, %v1322
    %v1346 = vadd.f32 %v1340, %v1345
    %v1347 = vmul.f32 %v1339, %v1302
    %v1348 = vmul.f32 %v1344, %v1338
    %v1349 = vadd.f32 %v1347, %v1348
    %v1350 = vmul.f32 %v1346, %v1346
    %v1351 = vmul.f32 %v1349, %v1349
    %v1352 = vadd.f32 %v1350, %v1351
    %v1353 = vld [vmem:[%s8] sm:$0x1]
    %v1354 = vlaneseq
    %v1355 = vshrl.u32 %v1354, 7
    %v1356 = vsub.s32 0, %v1355
    %v1357 = vrot.slane %v1353, %v1356
    %v1358 = vmul.f32 %v1352, %v1357
    %vm1359 = vcmask 130048
    %v1360 = vsel %vm1359, %v1358, 0.0
    %1361 = vadd.xlane.f32.xlu0 %v1360
    %v1362 = vpop.xlane.xlu0 %1361
    %v1363 = vld [vmem:[%s8 + $0x1] sm:$0x1]
    %v1364 = vlaneseq
    %v1365 = vshrl.u32 %v1364, 7
    %v1366 = vsub.s32 0, %v1365
    %v1367 = vrot.slane %v1363, %v1366
    %v1368 = vmul.f32 %v1352, %v1367
    %v1369 = vsel %vm1359, %v1368, 0.0
    %1370 = vadd.xlane.f32.xlu0 %v1369
    %v1371 = vpop.xlane.xlu0 %1370
    %v1372 = vld [vmem:[%s8 + $0x2] sm:$0x1]
    %v1373 = vlaneseq
    %v1374 = vshrl.u32 %v1373, 7
    %v1375 = vsub.s32 0, %v1374
    %v1376 = vrot.slane %v1372, %v1375
    %v1377 = vmul.f32 %v1352, %v1376
    %v1378 = vsel %vm1359, %v1377, 0.0
    %1379 = vadd.xlane.f32.xlu0 %v1378
    %v1380 = vpop.xlane.xlu0 %1379
    %v1381 = vld [vmem:[%s8 + $0x3] sm:$0x1]
    %v1382 = vlaneseq
    %v1383 = vshrl.u32 %v1382, 7
    %v1384 = vsub.s32 0, %v1383
    %v1385 = vrot.slane %v1381, %v1384
    %v1386 = vmul.f32 %v1352, %v1385
    %v1387 = vsel %vm1359, %v1386, 0.0
    %1388 = vadd.xlane.f32.xlu0 %v1387
    %v1389 = vpop.xlane.xlu0 %1388
    %v1390 = vsel %vm459, %v1362, %v1371
    %v1391 = vsel %vm405, %v1390, %v1380
    %vm1392 = vcmask 23552
    %v1393 = vsel %vm1392, %v1391, %v1389
    %v1394 = vld [vmem:[%s5] sm:$0x1]
    %v1396 = vlaneseq
    %v1397 = vshrl.u32 %v1396, 7
    %v1398 = vsub.s32 0, %v1397
    %v1399 = vrot.slane %v1394, %v1398
    %v1401 = vmul.f32 %v1393, %v1399
    %v1402 = vsel %vm351, %v1401, -inf
    %1403 = vmax.xlane.f32.xlu0 %v1402
    %v1404 = vpop.xlane.xlu0 %1403
    %v1405 = vsub.f32 %v1401, %v1404
    %v1406 = vmul.f32 %v1405, 1.442695
    %v1407 = vpow.pop %v1406
    %v1408 = vsel %vm351, %v1407, 0.0
    %1409 = vadd.xlane.f32.xlu0 %v1408
    %v1410 = vpop.xlane.xlu0 %1409
    %v1411 = vlog2.pop %v1410
    %v1412 = vmul.f32 %v1411, 0.6931472
    %v1413 = vadd.f32 %v1404, %v1412
    %v1414 = vsub.f32 %v1401, %v1413
    %v1415 = vld [vmem:[%s9] sm:$0xff]
    %v1416 = vadd.f32 %v1414, %v1415
    %v1417 = vsel %vm351, %v1416, -inf
    %1418 = vmax.xlane.f32.xlu0 %v1417
    %v1419 = vpop.xlane.xlu0 %1418
    %vm1420 = vcmp.ge.f32.partialorder %v1416, %v1419
    %v1421 = vsel %vm1420, %v85, 4
    %v1422 = vsel %vm351, %v1421, 2147483647
    %v1423 = vand.u32 %v1422, 65535
    %v1424 = vshra.s32 %v1422, 16
    %v1425 = vcvt.s32.f32 %v1423
    %v1426 = vcvt.s32.f32 %v1424
    %1427 = vmin.xlane.f32.xlu0 %v1426
    %v1428 = vpop.xlane.xlu0 %1427
    %vm1429 = vcmp.eq.f32.partialorder %v1426, %v1428
    %v1430 = vsel %vm1429, %v1425, inf
    %1431 = vmin.xlane.f32.xlu0 %v1430
    %v1432 = vpop.xlane.xlu0 %1431
    %v1433 = vcvt.f32.s32 %v1432
    %v1434 = vcvt.f32.s32 %v1428
    %v1435 = vshll.u32 %v1434, 16
    %v1436 = vadd.s32 %v1435, %v1433
    %vm1437 = vcmp.eq.s32.totalorder %v85, %v1436
    %v1438 = vsel %vm1437, %v1414, 0.0
    %v1439 = vsel %vm351, %v1438, 0.0
    %1440 = vadd.xlane.f32.xlu0 %v1439
    %v1441 = vpop.xlane.xlu0 %1440
    %v1442 = vcvt.s32.f32 %v1436
    %vm1443 = vcmp.eq.s32.totalorder %v85, 1
    %v1444 = vsel %vm1443, %v1441, 0.0
    %v1445 = vsel %vm86, %v1442, %v1444
    %1446 = vst [vmem:[#allocation10] sm:$0xff] %v1445
    // Predicated region
    $region58: #{tpu_custom_call.1} parent=1 // pred_check
      _
    $region59: #{tpu_custom_call.1} parent=1 // pred_check_branch
      %1448 = sbr.rel (0) target = $region61
    $region60: #{tpu_custom_call.1} parent=1 // pred_region
      %s1450 = ssub.s32 128, 128
      %1451 = vsyncadd [#allocation3], %s1450
      %s1453 = sshll.u32 [#allocation10], 4
      %s1454 = int_to_ptr.vmem [resolvable:$true] %s1453
      %1456 = dma.vmem_to_hbm [thread:$0]  %s1454, 128, %s10, [#allocation3]
    $region61: #{tpu_custom_call.1} parent=1 // pred_fallthru
      _
    // Predicated region
    $region62: #{tpu_custom_call.1} parent=1 // pred_check
      _
    $region63: #{tpu_custom_call.1} parent=1 // pred_check_branch
      %1458 = sbr.rel (0) target = $region65
    $region64: #{tpu_custom_call.1} parent=1 // pred_region
      %1459 = dma.done [#allocation3], 128
    $region65: #{tpu_custom_call.1} parent=1 // pred_fallthru
      _
    %1460 = vsyncpa [#allocation3], 1
    %1461 = vsyncpa [#allocation4], 1
    %1462 = vsyncpa [#allocation6], 1
    %1463 = vsyncpa [#allocation9], 1

</llo_original>
